<compile_context>
chip_gen: v6e
topology: v6e:2x2x1
jax: 0.10.0
libtpu: 0.0.40
codegen_flags: <defaults>
</compile_context>

<pallas_src>
import math

import jax
import jax.numpy as jnp
from jax.experimental import pallas as pl
from jax.experimental.pallas import tpu as pltpu


# ---------------- model config (small, consistent with the module) -----------
N_BATCH = 2          # N
SEQ_LEN = 16         # L (tokens being pooled)
CONTEXT_DIM = 32     # context_dim (kdim/vdim)
D_MODEL = 32         # d_model (embed dim)
N_HEAD = 4           # n_head
N_QUERIES = 8        # n_queries
HEAD_DIM = D_MODEL // N_HEAD
LN_EPS = 1e-5


def _layernorm(x, gamma, beta, eps=LN_EPS):
    # PyTorch LayerNorm: biased variance over the last dim.
    mu = jnp.mean(x, axis=-1, keepdims=True)
    var = jnp.mean((x - mu) ** 2, axis=-1, keepdims=True)
    return (x - mu) * jax.lax.rsqrt(var + eps) * gamma + beta


def _attn_pool_kernel(x_ref, w_ref, misc_ref, out_ref):
    D, C = D_MODEL, CONTEXT_DIM
    H, hd, Q = N_HEAD, HEAD_DIM, N_QUERIES
    nl = x_ref.shape[0]
    n_batch = out_ref.shape[0] // Q
    L = nl // n_batch
    scale = 1.0 / math.sqrt(hd)

    # ---- carve packed parameter slabs (static slices, no extra DMAs) --------
    wq_t = w_ref[0:D, 0:D]                 # (D, D)   = Wq^T
    wkv_t = w_ref[0:C, D:3 * D]            # (C, 2D)  = [Wk^T | Wv^T]
    wo_t = w_ref[0:D, 3 * D:4 * D]         # (D, D)   = Wo^T

    query = misc_ref[0:Q, 0:D]             # (Q, D)
    bq = misc_ref[Q:Q + 1, 0:D]            # (1, D)
    bkv = misc_ref[Q:Q + 1, D:3 * D]       # (1, 2D)  = [bk | bv]
    bo = misc_ref[Q:Q + 1, 3 * D:4 * D]    # (1, D)
    lnq_g = misc_ref[Q + 1:Q + 2, 0:D]
    lnq_b = misc_ref[Q + 1:Q + 2, D:2 * D]
    lnk_g = misc_ref[Q + 1:Q + 2, 2 * D:2 * D + C]
    lnk_b = misc_ref[Q + 1:Q + 2, 2 * D + C:2 * D + 2 * C]

    # ---- LayerNorms (VPU/EUP), once for the whole problem, f32 --------------
    xk = _layernorm(x_ref[...].astype(jnp.float32), lnk_g, lnk_b)     # (N*L, C)
    qn = _layernorm(query.astype(jnp.float32), lnq_g, lnq_b)          # (Q, D)

    # ---- lane-dense 2D projections (K and V fused into one matmul) ----------
    qp = (jnp.dot(qn, wq_t, preferred_element_type=jnp.float32) + bq) * scale   # (Q, D)
    kv = jnp.dot(xk, wkv_t, preferred_element_type=jnp.float32) + bkv           # (N*L, 2D)
    k2d = kv[:, 0:D]                                                   # (N*L, D)
    v2d = kv[:, D:2 * D]                                               # (N*L, D)

    # ---- attention: split heads only here (static lane slices) --------------
    # N and H are tiny and static -> fully unrolled, no grid-step overhead.
    o_parts = []
    for n in range(n_batch):
        k_n = k2d[n * L:(n + 1) * L, :]    # (L, D)
        v_n = v2d[n * L:(n + 1) * L, :]    # (L, D)
        heads = []
        for h in range(H):
            sl = slice(h * hd, (h + 1) * hd)
            q_h = qp[:, sl]                # (Q, hd)
            k_h = k_n[:, sl]               # (L, hd)
            v_h = v_n[:, sl]               # (L, hd)
            # scores contract the last dims directly (no k.T materialization)
            s = jax.lax.dot_general(q_h, k_h, (((1,), (1,)), ((), ())),
                                    preferred_element_type=jnp.float32)  # (Q, L)
            s = s - jnp.max(s, axis=-1, keepdims=True)
            p = jnp.exp(s)
            p = p / jnp.sum(p, axis=-1, keepdims=True)   # exact division
            heads.append(jnp.dot(p, v_h, preferred_element_type=jnp.float32))  # (Q, hd)
        o_parts.append(jnp.concatenate(heads, axis=-1))  # (Q, D)

    # Single output projection for all batch elements: (N*Q, D) @ (D, D) + bo.
    o_all = jnp.concatenate(o_parts, axis=0)                            # (N*Q, D)
    out = jnp.dot(o_all, wo_t, preferred_element_type=jnp.float32) + bo
    out_ref[...] = out.astype(out_ref.dtype)


def prepare_params(params):
    """One-time host-side packing of all small parameters into two lane-dense
    f32 slabs (hoisted out of the per-call path)."""
    D, C, Q = D_MODEL, CONTEXT_DIM, N_QUERIES
    lanes = max(4 * D, 2 * D + 2 * C)      # 128 for this config
    rows = max(D, C)

    def pad_rows(w):
        return jnp.pad(w, ((0, rows - w.shape[0]), (0, 0)))

    w_slab = jnp.concatenate(
        [pad_rows(params["wq"].T), pad_rows(params["wk"].T),
         pad_rows(params["wv"].T), pad_rows(params["wo"].T)], axis=1)   # (rows, 4D)
    w_slab = jnp.pad(w_slab, ((0, 0), (0, lanes - 4 * D)))

    def row(vecs):
        v = jnp.concatenate(vecs)
        return jnp.pad(v, (0, lanes - v.shape[0]))[None, :]

    q_rows = jnp.pad(params["query"], ((0, 0), (0, lanes - D)))          # (Q, lanes)
    bias_row = row([params["bq"], params["bk"], params["bv"], params["bo"]])
    ln_row = row([params["lnq_g"], params["lnq_b"],
                  params["lnk_g"], params["lnk_b"]])
    misc = jnp.concatenate([q_rows, bias_row, ln_row], axis=0)           # (Q+2, lanes)

    return {"w_slab": w_slab.astype(jnp.float32),
            "misc": misc.astype(jnp.float32)}


def attentional_pooler(x, packed):
    """x: (N, L, context_dim) -> (N, n_queries, d_model)."""
    N, L, C = x.shape
    Q, D = N_QUERIES, D_MODEL
    w_slab, misc = packed["w_slab"], packed["misc"]

    x2d = x.reshape(N * L, C)   # flatten batch for LN(k) + fused K/V projection

    def full(shape):
        return pl.BlockSpec(shape, lambda i, _s=shape: (0,) * len(_s))

    grid_spec = pltpu.PrefetchScalarGridSpec(
        num_scalar_prefetch=0,
        grid=(1,),   # single fused step: whole working set fits in VMEM/vregs
        in_specs=[
            full((N * L, C)),        # x (flattened)
            full(w_slab.shape),      # packed weights  [Wq^T|Wk^T|Wv^T|Wo^T]
            full(misc.shape),        # packed query / biases / LayerNorm params
        ],
        out_specs=full((N * Q, D)),
    )

    out2d = pl.pallas_call(
        _attn_pool_kernel,
        out_shape=jax.ShapeDtypeStruct((N * Q, D), jnp.float32),
        grid_spec=grid_spec,
        compiler_params=pltpu.CompilerParams(dimension_semantics=("arbitrary",)),
    )(x2d, w_slab, misc)
    return out2d.reshape(N, Q, D)


# ------------------------- pure-JAX reference (sanity check) -----------------
def attentional_pooler_ref(x, params):
    xk = _layernorm(x, params["lnk_g"], params["lnk_b"])               # (N, L, C)
    qn = _layernorm(params["query"], params["lnq_g"], params["lnq_b"]) # (Q, D)

    qp = qn @ params["wq"].T + params["bq"]                            # (Q, D)
    kp = xk @ params["wk"].T + params["bk"]                            # (N, L, D)
    vp = xk @ params["wv"].T + params["bv"]                            # (N, L, D)

    N, L, _ = x.shape
    Q = qp.shape[0]
    qh = qp.reshape(Q, N_HEAD, HEAD_DIM)
    kh = kp.reshape(N, L, N_HEAD, HEAD_DIM)
    vh = vp.reshape(N, L, N_HEAD, HEAD_DIM)

    scale = 1.0 / math.sqrt(HEAD_DIM)
    s = jnp.einsum("qhd,nlhd->nhql", qh * scale, kh)
    p = jax.nn.softmax(s, axis=-1)
    o = jnp.einsum("nhql,nlhd->nqhd", p, vh).reshape(N, Q, D_MODEL)
    return o @ params["wo"].T + params["bo"]


def make_params(key):
    ks = jax.random.split(key, 12)
    f32 = jnp.float32
    return {
        "query":  jax.random.normal(ks[0], (N_QUERIES, D_MODEL), f32),
        "wq": jax.random.normal(ks[1], (D_MODEL, D_MODEL), f32) * 0.05,
        "wk": jax.random.normal(ks[2], (D_MODEL, CONTEXT_DIM), f32) * 0.05,
        "wv": jax.random.normal(ks[3], (D_MODEL, CONTEXT_DIM), f32) * 0.05,
        "bq": jax.random.normal(ks[4], (D_MODEL,), f32) * 0.01,
        "bk": jax.random.normal(ks[5], (D_MODEL,), f32) * 0.01,
        "bv": jax.random.normal(ks[6], (D_MODEL,), f32) * 0.01,
        "wo": jax.random.normal(ks[7], (D_MODEL, D_MODEL), f32) * 0.05,
        "bo": jax.random.normal(ks[8], (D_MODEL,), f32) * 0.01,
        "lnq_g": jnp.ones((D_MODEL,), f32),
        "lnq_b": jnp.zeros((D_MODEL,), f32),
        "lnk_g": jnp.ones((CONTEXT_DIM,), f32),
        "lnk_b": jnp.zeros((CONTEXT_DIM,), f32),
    }


if __name__ == "__main__":
    key = jax.random.PRNGKey(0)
    k_x, k_p = jax.random.split(key)

    x = jax.random.normal(k_x, (N_BATCH, SEQ_LEN, CONTEXT_DIM), jnp.float32)
    params = make_params(k_p)
    packed = prepare_params(params)   # one-time parameter preparation

    out = attentional_pooler(x, packed)
    out = jax.block_until_ready(out)

    ref = attentional_pooler_ref(x, params)
    assert out.shape == (N_BATCH, N_QUERIES, D_MODEL)
    assert jnp.allclose(out, ref, atol=1e-4, rtol=1e-4), "mismatch vs reference"

    print("KERNEL_OK")
</pallas_src>

<mosaic_0001>
module attributes {stable_mosaic.version = 11 : i64} {
  func.func @_attn_pool_kernel(%arg0: i32, %arg1: memref<32x32xf32, #tpu.memory_space<vmem>>, %arg2: memref<32x128xf32, #tpu.memory_space<vmem>>, %arg3: memref<10x128xf32, #tpu.memory_space<vmem>>, %arg4: memref<16x32xf32, #tpu.memory_space<vmem>>) attributes {dimension_semantics = [#tpu.dimension_semantics<arbitrary>], iteration_bounds = array<i64: 1>, scalar_prefetch = 0 : i64, scratch_operands = 0 : i64, tpu.core_type = #tpu.core_type<tc>, window_params = [{pipeline_mode = #tpu.pipeline_mode<synchronous>, transform_indices = @transform_0, window_bounds = array<i64: 32, 32>}, {pipeline_mode = #tpu.pipeline_mode<synchronous>, transform_indices = @transform_1, window_bounds = array<i64: 32, 128>}, {pipeline_mode = #tpu.pipeline_mode<synchronous>, transform_indices = @transform_2, window_bounds = array<i64: 10, 128>}, {pipeline_mode = #tpu.pipeline_mode<synchronous>, transform_indices = @transform_3, window_bounds = array<i64: 16, 32>}]} {
    %c0 = arith.constant 0 : index
    %c0_0 = arith.constant 0 : index
    %0 = vector.load %arg2[%c0, %c0_0] : memref<32x128xf32, #tpu.memory_space<vmem>>, vector<32x32xf32>
    %c0_1 = arith.constant 0 : index
    %c32 = arith.constant 32 : index
    %1 = vector.load %arg2[%c0_1, %c32] : memref<32x128xf32, #tpu.memory_space<vmem>>, vector<32x64xf32>
    %c0_2 = arith.constant 0 : index
    %c96 = arith.constant 96 : index
    %2 = vector.load %arg2[%c0_2, %c96] : memref<32x128xf32, #tpu.memory_space<vmem>>, vector<32x32xf32>
    %c0_3 = arith.constant 0 : index
    %c0_4 = arith.constant 0 : index
    %3 = vector.load %arg3[%c0_3, %c0_4] : memref<10x128xf32, #tpu.memory_space<vmem>>, vector<8x32xf32>
    %c8 = arith.constant 8 : index
    %c0_5 = arith.constant 0 : index
    %4 = vector.load %arg3[%c8, %c0_5] : memref<10x128xf32, #tpu.memory_space<vmem>>, vector<1x32xf32>
    %c8_6 = arith.constant 8 : index
    %c32_7 = arith.constant 32 : index
    %5 = vector.load %arg3[%c8_6, %c32_7] : memref<10x128xf32, #tpu.memory_space<vmem>>, vector<1x64xf32>
    %c8_8 = arith.constant 8 : index
    %c96_9 = arith.constant 96 : index
    %6 = vector.load %arg3[%c8_8, %c96_9] : memref<10x128xf32, #tpu.memory_space<vmem>>, vector<1x32xf32>
    %c9 = arith.constant 9 : index
    %c0_10 = arith.constant 0 : index
    %7 = vector.load %arg3[%c9, %c0_10] : memref<10x128xf32, #tpu.memory_space<vmem>>, vector<1x32xf32>
    %c9_11 = arith.constant 9 : index
    %c32_12 = arith.constant 32 : index
    %8 = vector.load %arg3[%c9_11, %c32_12] : memref<10x128xf32, #tpu.memory_space<vmem>>, vector<1x32xf32>
    %c9_13 = arith.constant 9 : index
    %c64 = arith.constant 64 : index
    %9 = vector.load %arg3[%c9_13, %c64] : memref<10x128xf32, #tpu.memory_space<vmem>>, vector<1x32xf32>
    %c9_14 = arith.constant 9 : index
    %c96_15 = arith.constant 96 : index
    %10 = vector.load %arg3[%c9_14, %c96_15] : memref<10x128xf32, #tpu.memory_space<vmem>>, vector<1x32xf32>
    %c0_16 = arith.constant 0 : index
    %c0_17 = arith.constant 0 : index
    %11 = vector.load %arg1[%c0_16, %c0_17] : memref<32x32xf32, #tpu.memory_space<vmem>>, vector<32x32xf32>
    %cst = arith.constant dense<0.000000e+00> : vector<32xf32>
    %12 = vector.multi_reduction <add>, %11, %cst [1] : vector<32x32xf32> to vector<32xf32>
    %13 = vector.shape_cast %12 : vector<32xf32> to vector<32x1xf32>
    %cst_18 = arith.constant 3.200000e+01 : f32
    %14 = vector.broadcast %cst_18 : f32 to vector<32x1xf32>
    %15 = arith.divf %13, %14 : vector<32x1xf32>
    %16 = vector.broadcast %15 : vector<32x1xf32> to vector<32x32xf32>
    %17 = arith.subf %11, %16 : vector<32x32xf32>
    %18 = arith.mulf %17, %17 : vector<32x32xf32>
    %cst_19 = arith.constant dense<0.000000e+00> : vector<32xf32>
    %19 = vector.multi_reduction <add>, %18, %cst_19 [1] : vector<32x32xf32> to vector<32xf32>
    %20 = vector.shape_cast %19 : vector<32xf32> to vector<32x1xf32>
    %cst_20 = arith.constant 3.200000e+01 : f32
    %21 = vector.broadcast %cst_20 : f32 to vector<32x1xf32>
    %22 = arith.divf %20, %21 : vector<32x1xf32>
    %23 = vector.broadcast %15 : vector<32x1xf32> to vector<32x32xf32>
    %24 = arith.subf %11, %23 : vector<32x32xf32>
    %cst_21 = arith.constant 9.99999974E-6 : f32
    %25 = vector.broadcast %cst_21 : f32 to vector<32x1xf32>
    %26 = arith.addf %22, %25 : vector<32x1xf32>
    %27 = math.rsqrt %26 : vector<32x1xf32>
    %28 = vector.broadcast %27 : vector<32x1xf32> to vector<32x32xf32>
    %29 = arith.mulf %24, %28 : vector<32x32xf32>
    %30 = vector.broadcast %9 : vector<1x32xf32> to vector<32x32xf32>
    %31 = arith.mulf %29, %30 : vector<32x32xf32>
    %32 = vector.broadcast %10 : vector<1x32xf32> to vector<32x32xf32>
    %33 = arith.addf %31, %32 : vector<32x32xf32>
    %cst_22 = arith.constant dense<0.000000e+00> : vector<8xf32>
    %34 = vector.multi_reduction <add>, %3, %cst_22 [1] : vector<8x32xf32> to vector<8xf32>
    %35 = vector.shape_cast %34 : vector<8xf32> to vector<8x1xf32>
    %cst_23 = arith.constant 3.200000e+01 : f32
    %36 = vector.broadcast %cst_23 : f32 to vector<8x1xf32>
    %37 = arith.divf %35, %36 : vector<8x1xf32>
    %38 = vector.broadcast %37 : vector<8x1xf32> to vector<8x32xf32>
    %39 = arith.subf %3, %38 : vector<8x32xf32>
    %40 = arith.mulf %39, %39 : vector<8x32xf32>
    %cst_24 = arith.constant dense<0.000000e+00> : vector<8xf32>
    %41 = vector.multi_reduction <add>, %40, %cst_24 [1] : vector<8x32xf32> to vector<8xf32>
    %42 = vector.shape_cast %41 : vector<8xf32> to vector<8x1xf32>
    %cst_25 = arith.constant 3.200000e+01 : f32
    %43 = vector.broadcast %cst_25 : f32 to vector<8x1xf32>
    %44 = arith.divf %42, %43 : vector<8x1xf32>
    %45 = vector.broadcast %37 : vector<8x1xf32> to vector<8x32xf32>
    %46 = arith.subf %3, %45 : vector<8x32xf32>
    %cst_26 = arith.constant 9.99999974E-6 : f32
    %47 = vector.broadcast %cst_26 : f32 to vector<8x1xf32>
    %48 = arith.addf %44, %47 : vector<8x1xf32>
    %49 = math.rsqrt %48 : vector<8x1xf32>
    %50 = vector.broadcast %49 : vector<8x1xf32> to vector<8x32xf32>
    %51 = arith.mulf %46, %50 : vector<8x32xf32>
    %52 = vector.broadcast %7 : vector<1x32xf32> to vector<8x32xf32>
    %53 = arith.mulf %51, %52 : vector<8x32xf32>
    %54 = vector.broadcast %8 : vector<1x32xf32> to vector<8x32xf32>
    %55 = arith.addf %53, %54 : vector<8x32xf32>
    %cst_27 = arith.constant dense<0.000000e+00> : vector<8x32xf32>
    %56 = tpu.matmul %55, %0, %cst_27 {dimension_numbers = #tpu.dot_dimension_numbers<[1], [0], [0], [1], [0, 0, 1, 1], [], []>} : vector<8x32xf32>, vector<32x32xf32>, vector<8x32xf32> -> vector<8x32xf32>
    %57 = vector.broadcast %4 : vector<1x32xf32> to vector<8x32xf32>
    %58 = arith.addf %56, %57 : vector<8x32xf32>
    %cst_28 = arith.constant 0.353553385 : f32
    %59 = vector.broadcast %cst_28 : f32 to vector<8x32xf32>
    %60 = arith.mulf %58, %59 : vector<8x32xf32>
    %cst_29 = arith.constant dense<0.000000e+00> : vector<32x64xf32>
    %61 = tpu.matmul %33, %1, %cst_29 {dimension_numbers = #tpu.dot_dimension_numbers<[1], [0], [0], [1], [0, 0, 1, 1], [], []>} : vector<32x32xf32>, vector<32x64xf32>, vector<32x64xf32> -> vector<32x64xf32>
    %62 = vector.broadcast %5 : vector<1x64xf32> to vector<32x64xf32>
    %63 = arith.addf %61, %62 : vector<32x64xf32>
    %64 = vector.extract_strided_slice %63 {offsets = [0, 0], sizes = [32, 32], strides = [1, 1]} : vector<32x64xf32> to vector<32x32xf32>
    %65 = vector.extract_strided_slice %63 {offsets = [0, 32], sizes = [32, 32], strides = [1, 1]} : vector<32x64xf32> to vector<32x32xf32>
    %66 = vector.extract_strided_slice %64 {offsets = [0, 0], sizes = [16, 32], strides = [1, 1]} : vector<32x32xf32> to vector<16x32xf32>
    %67 = vector.extract_strided_slice %65 {offsets = [0, 0], sizes = [16, 32], strides = [1, 1]} : vector<32x32xf32> to vector<16x32xf32>
    %68 = vector.extract_strided_slice %60 {offsets = [0, 0], sizes = [8, 8], strides = [1, 1]} : vector<8x32xf32> to vector<8x8xf32>
    %69 = vector.extract_strided_slice %66 {offsets = [0, 0], sizes = [16, 8], strides = [1, 1]} : vector<16x32xf32> to vector<16x8xf32>
    %70 = vector.extract_strided_slice %67 {offsets = [0, 0], sizes = [16, 8], strides = [1, 1]} : vector<16x32xf32> to vector<16x8xf32>
    %cst_30 = arith.constant dense<0.000000e+00> : vector<8x16xf32>
    %71 = tpu.matmul %68, %69, %cst_30 {dimension_numbers = #tpu.dot_dimension_numbers<[1], [1], [0], [0], [0, 0, 1, 0], [], []>} : vector<8x8xf32>, vector<16x8xf32>, vector<8x16xf32> -> vector<8x16xf32>
    %cst_31 = arith.constant dense<0xFF800000> : vector<8xf32>
    %72 = vector.multi_reduction <maximumf>, %71, %cst_31 [1] : vector<8x16xf32> to vector<8xf32>
    %73 = vector.shape_cast %72 : vector<8xf32> to vector<8x1xf32>
    %74 = vector.broadcast %73 : vector<8x1xf32> to vector<8x16xf32>
    %75 = arith.subf %71, %74 : vector<8x16xf32>
    %76 = math.exp %75 : vector<8x16xf32>
    %cst_32 = arith.constant dense<0.000000e+00> : vector<8xf32>
    %77 = vector.multi_reduction <add>, %76, %cst_32 [1] : vector<8x16xf32> to vector<8xf32>
    %78 = vector.shape_cast %77 : vector<8xf32> to vector<8x1xf32>
    %79 = vector.broadcast %78 : vector<8x1xf32> to vector<8x16xf32>
    %80 = arith.divf %76, %79 : vector<8x16xf32>
    %cst_33 = arith.constant dense<0.000000e+00> : vector<8x8xf32>
    %81 = tpu.matmul %80, %70, %cst_33 {dimension_numbers = #tpu.dot_dimension_numbers<[1], [0], [0], [1], [0, 0, 1, 1], [], []>} : vector<8x16xf32>, vector<16x8xf32>, vector<8x8xf32> -> vector<8x8xf32>
    %82 = vector.extract_strided_slice %60 {offsets = [0, 8], sizes = [8, 8], strides = [1, 1]} : vector<8x32xf32> to vector<8x8xf32>
    %83 = vector.extract_strided_slice %66 {offsets = [0, 8], sizes = [16, 8], strides = [1, 1]} : vector<16x32xf32> to vector<16x8xf32>
    %84 = vector.extract_strided_slice %67 {offsets = [0, 8], sizes = [16, 8], strides = [1, 1]} : vector<16x32xf32> to vector<16x8xf32>
    %cst_34 = arith.constant dense<0.000000e+00> : vector<8x16xf32>
    %85 = tpu.matmul %82, %83, %cst_34 {dimension_numbers = #tpu.dot_dimension_numbers<[1], [1], [0], [0], [0, 0, 1, 0], [], []>} : vector<8x8xf32>, vector<16x8xf32>, vector<8x16xf32> -> vector<8x16xf32>
    %cst_35 = arith.constant dense<0xFF800000> : vector<8xf32>
    %86 = vector.multi_reduction <maximumf>, %85, %cst_35 [1] : vector<8x16xf32> to vector<8xf32>
    %87 = vector.shape_cast %86 : vector<8xf32> to vector<8x1xf32>
    %88 = vector.broadcast %87 : vector<8x1xf32> to vector<8x16xf32>
    %89 = arith.subf %85, %88 : vector<8x16xf32>
    %90 = math.exp %89 : vector<8x16xf32>
    %cst_36 = arith.constant dense<0.000000e+00> : vector<8xf32>
    %91 = vector.multi_reduction <add>, %90, %cst_36 [1] : vector<8x16xf32> to vector<8xf32>
    %92 = vector.shape_cast %91 : vector<8xf32> to vector<8x1xf32>
    %93 = vector.broadcast %92 : vector<8x1xf32> to vector<8x16xf32>
    %94 = arith.divf %90, %93 : vector<8x16xf32>
    %cst_37 = arith.constant dense<0.000000e+00> : vector<8x8xf32>
    %95 = tpu.matmul %94, %84, %cst_37 {dimension_numbers = #tpu.dot_dimension_numbers<[1], [0], [0], [1], [0, 0, 1, 1], [], []>} : vector<8x16xf32>, vector<16x8xf32>, vector<8x8xf32> -> vector<8x8xf32>
    %96 = vector.extract_strided_slice %60 {offsets = [0, 16], sizes = [8, 8], strides = [1, 1]} : vector<8x32xf32> to vector<8x8xf32>
    %97 = vector.extract_strided_slice %66 {offsets = [0, 16], sizes = [16, 8], strides = [1, 1]} : vector<16x32xf32> to vector<16x8xf32>
    %98 = vector.extract_strided_slice %67 {offsets = [0, 16], sizes = [16, 8], strides = [1, 1]} : vector<16x32xf32> to vector<16x8xf32>
    %cst_38 = arith.constant dense<0.000000e+00> : vector<8x16xf32>
    %99 = tpu.matmul %96, %97, %cst_38 {dimension_numbers = #tpu.dot_dimension_numbers<[1], [1], [0], [0], [0, 0, 1, 0], [], []>} : vector<8x8xf32>, vector<16x8xf32>, vector<8x16xf32> -> vector<8x16xf32>
    %cst_39 = arith.constant dense<0xFF800000> : vector<8xf32>
    %100 = vector.multi_reduction <maximumf>, %99, %cst_39 [1] : vector<8x16xf32> to vector<8xf32>
    %101 = vector.shape_cast %100 : vector<8xf32> to vector<8x1xf32>
    %102 = vector.broadcast %101 : vector<8x1xf32> to vector<8x16xf32>
    %103 = arith.subf %99, %102 : vector<8x16xf32>
    %104 = math.exp %103 : vector<8x16xf32>
    %cst_40 = arith.constant dense<0.000000e+00> : vector<8xf32>
    %105 = vector.multi_reduction <add>, %104, %cst_40 [1] : vector<8x16xf32> to vector<8xf32>
    %106 = vector.shape_cast %105 : vector<8xf32> to vector<8x1xf32>
    %107 = vector.broadcast %106 : vector<8x1xf32> to vector<8x16xf32>
    %108 = arith.divf %104, %107 : vector<8x16xf32>
    %cst_41 = arith.constant dense<0.000000e+00> : vector<8x8xf32>
    %109 = tpu.matmul %108, %98, %cst_41 {dimension_numbers = #tpu.dot_dimension_numbers<[1], [0], [0], [1], [0, 0, 1, 1], [], []>} : vector<8x16xf32>, vector<16x8xf32>, vector<8x8xf32> -> vector<8x8xf32>
    %110 = vector.extract_strided_slice %60 {offsets = [0, 24], sizes = [8, 8], strides = [1, 1]} : vector<8x32xf32> to vector<8x8xf32>
    %111 = vector.extract_strided_slice %66 {offsets = [0, 24], sizes = [16, 8], strides = [1, 1]} : vector<16x32xf32> to vector<16x8xf32>
    %112 = vector.extract_strided_slice %67 {offsets = [0, 24], sizes = [16, 8], strides = [1, 1]} : vector<16x32xf32> to vector<16x8xf32>
    %cst_42 = arith.constant dense<0.000000e+00> : vector<8x16xf32>
    %113 = tpu.matmul %110, %111, %cst_42 {dimension_numbers = #tpu.dot_dimension_numbers<[1], [1], [0], [0], [0, 0, 1, 0], [], []>} : vector<8x8xf32>, vector<16x8xf32>, vector<8x16xf32> -> vector<8x16xf32>
    %cst_43 = arith.constant dense<0xFF800000> : vector<8xf32>
    %114 = vector.multi_reduction <maximumf>, %113, %cst_43 [1] : vector<8x16xf32> to vector<8xf32>
    %115 = vector.shape_cast %114 : vector<8xf32> to vector<8x1xf32>
    %116 = vector.broadcast %115 : vector<8x1xf32> to vector<8x16xf32>
    %117 = arith.subf %113, %116 : vector<8x16xf32>
    %118 = math.exp %117 : vector<8x16xf32>
    %cst_44 = arith.constant dense<0.000000e+00> : vector<8xf32>
    %119 = vector.multi_reduction <add>, %118, %cst_44 [1] : vector<8x16xf32> to vector<8xf32>
    %120 = vector.shape_cast %119 : vector<8xf32> to vector<8x1xf32>
    %121 = vector.broadcast %120 : vector<8x1xf32> to vector<8x16xf32>
    %122 = arith.divf %118, %121 : vector<8x16xf32>
    %cst_45 = arith.constant dense<0.000000e+00> : vector<8x8xf32>
    %123 = tpu.matmul %122, %112, %cst_45 {dimension_numbers = #tpu.dot_dimension_numbers<[1], [0], [0], [1], [0, 0, 1, 1], [], []>} : vector<8x16xf32>, vector<16x8xf32>, vector<8x8xf32> -> vector<8x8xf32>
    %124 = tpu.concatenate %81, %95, %109, %123 in 1 : vector<8x8xf32>, vector<8x8xf32>, vector<8x8xf32>, vector<8x8xf32> -> vector<8x32xf32>
    %125 = vector.extract_strided_slice %64 {offsets = [16, 0], sizes = [16, 32], strides = [1, 1]} : vector<32x32xf32> to vector<16x32xf32>
    %126 = vector.extract_strided_slice %65 {offsets = [16, 0], sizes = [16, 32], strides = [1, 1]} : vector<32x32xf32> to vector<16x32xf32>
    %127 = vector.extract_strided_slice %60 {offsets = [0, 0], sizes = [8, 8], strides = [1, 1]} : vector<8x32xf32> to vector<8x8xf32>
    %128 = vector.extract_strided_slice %125 {offsets = [0, 0], sizes = [16, 8], strides = [1, 1]} : vector<16x32xf32> to vector<16x8xf32>
    %129 = vector.extract_strided_slice %126 {offsets = [0, 0], sizes = [16, 8], strides = [1, 1]} : vector<16x32xf32> to vector<16x8xf32>
    %cst_46 = arith.constant dense<0.000000e+00> : vector<8x16xf32>
    %130 = tpu.matmul %127, %128, %cst_46 {dimension_numbers = #tpu.dot_dimension_numbers<[1], [1], [0], [0], [0, 0, 1, 0], [], []>} : vector<8x8xf32>, vector<16x8xf32>, vector<8x16xf32> -> vector<8x16xf32>
    %cst_47 = arith.constant dense<0xFF800000> : vector<8xf32>
    %131 = vector.multi_reduction <maximumf>, %130, %cst_47 [1] : vector<8x16xf32> to vector<8xf32>
    %132 = vector.shape_cast %131 : vector<8xf32> to vector<8x1xf32>
    %133 = vector.broadcast %132 : vector<8x1xf32> to vector<8x16xf32>
    %134 = arith.subf %130, %133 : vector<8x16xf32>
    %135 = math.exp %134 : vector<8x16xf32>
    %cst_48 = arith.constant dense<0.000000e+00> : vector<8xf32>
    %136 = vector.multi_reduction <add>, %135, %cst_48 [1] : vector<8x16xf32> to vector<8xf32>
    %137 = vector.shape_cast %136 : vector<8xf32> to vector<8x1xf32>
    %138 = vector.broadcast %137 : vector<8x1xf32> to vector<8x16xf32>
    %139 = arith.divf %135, %138 : vector<8x16xf32>
    %cst_49 = arith.constant dense<0.000000e+00> : vector<8x8xf32>
    %140 = tpu.matmul %139, %129, %cst_49 {dimension_numbers = #tpu.dot_dimension_numbers<[1], [0], [0], [1], [0, 0, 1, 1], [], []>} : vector<8x16xf32>, vector<16x8xf32>, vector<8x8xf32> -> vector<8x8xf32>
    %141 = vector.extract_strided_slice %60 {offsets = [0, 8], sizes = [8, 8], strides = [1, 1]} : vector<8x32xf32> to vector<8x8xf32>
    %142 = vector.extract_strided_slice %125 {offsets = [0, 8], sizes = [16, 8], strides = [1, 1]} : vector<16x32xf32> to vector<16x8xf32>
    %143 = vector.extract_strided_slice %126 {offsets = [0, 8], sizes = [16, 8], strides = [1, 1]} : vector<16x32xf32> to vector<16x8xf32>
    %cst_50 = arith.constant dense<0.000000e+00> : vector<8x16xf32>
    %144 = tpu.matmul %141, %142, %cst_50 {dimension_numbers = #tpu.dot_dimension_numbers<[1], [1], [0], [0], [0, 0, 1, 0], [], []>} : vector<8x8xf32>, vector<16x8xf32>, vector<8x16xf32> -> vector<8x16xf32>
    %cst_51 = arith.constant dense<0xFF800000> : vector<8xf32>
    %145 = vector.multi_reduction <maximumf>, %144, %cst_51 [1] : vector<8x16xf32> to vector<8xf32>
    %146 = vector.shape_cast %145 : vector<8xf32> to vector<8x1xf32>
    %147 = vector.broadcast %146 : vector<8x1xf32> to vector<8x16xf32>
    %148 = arith.subf %144, %147 : vector<8x16xf32>
    %149 = math.exp %148 : vector<8x16xf32>
    %cst_52 = arith.constant dense<0.000000e+00> : vector<8xf32>
    %150 = vector.multi_reduction <add>, %149, %cst_52 [1] : vector<8x16xf32> to vector<8xf32>
    %151 = vector.shape_cast %150 : vector<8xf32> to vector<8x1xf32>
    %152 = vector.broadcast %151 : vector<8x1xf32> to vector<8x16xf32>
    %153 = arith.divf %149, %152 : vector<8x16xf32>
    %cst_53 = arith.constant dense<0.000000e+00> : vector<8x8xf32>
    %154 = tpu.matmul %153, %143, %cst_53 {dimension_numbers = #tpu.dot_dimension_numbers<[1], [0], [0], [1], [0, 0, 1, 1], [], []>} : vector<8x16xf32>, vector<16x8xf32>, vector<8x8xf32> -> vector<8x8xf32>
    %155 = vector.extract_strided_slice %60 {offsets = [0, 16], sizes = [8, 8], strides = [1, 1]} : vector<8x32xf32> to vector<8x8xf32>
    %156 = vector.extract_strided_slice %125 {offsets = [0, 16], sizes = [16, 8], strides = [1, 1]} : vector<16x32xf32> to vector<16x8xf32>
    %157 = vector.extract_strided_slice %126 {offsets = [0, 16], sizes = [16, 8], strides = [1, 1]} : vector<16x32xf32> to vector<16x8xf32>
    %cst_54 = arith.constant dense<0.000000e+00> : vector<8x16xf32>
    %158 = tpu.matmul %155, %156, %cst_54 {dimension_numbers = #tpu.dot_dimension_numbers<[1], [1], [0], [0], [0, 0, 1, 0], [], []>} : vector<8x8xf32>, vector<16x8xf32>, vector<8x16xf32> -> vector<8x16xf32>
    %cst_55 = arith.constant dense<0xFF800000> : vector<8xf32>
    %159 = vector.multi_reduction <maximumf>, %158, %cst_55 [1] : vector<8x16xf32> to vector<8xf32>
    %160 = vector.shape_cast %159 : vector<8xf32> to vector<8x1xf32>
    %161 = vector.broadcast %160 : vector<8x1xf32> to vector<8x16xf32>
    %162 = arith.subf %158, %161 : vector<8x16xf32>
    %163 = math.exp %162 : vector<8x16xf32>
    %cst_56 = arith.constant dense<0.000000e+00> : vector<8xf32>
    %164 = vector.multi_reduction <add>, %163, %cst_56 [1] : vector<8x16xf32> to vector<8xf32>
    %165 = vector.shape_cast %164 : vector<8xf32> to vector<8x1xf32>
    %166 = vector.broadcast %165 : vector<8x1xf32> to vector<8x16xf32>
    %167 = arith.divf %163, %166 : vector<8x16xf32>
    %cst_57 = arith.constant dense<0.000000e+00> : vector<8x8xf32>
    %168 = tpu.matmul %167, %157, %cst_57 {dimension_numbers = #tpu.dot_dimension_numbers<[1], [0], [0], [1], [0, 0, 1, 1], [], []>} : vector<8x16xf32>, vector<16x8xf32>, vector<8x8xf32> -> vector<8x8xf32>
    %169 = vector.extract_strided_slice %60 {offsets = [0, 24], sizes = [8, 8], strides = [1, 1]} : vector<8x32xf32> to vector<8x8xf32>
    %170 = vector.extract_strided_slice %125 {offsets = [0, 24], sizes = [16, 8], strides = [1, 1]} : vector<16x32xf32> to vector<16x8xf32>
    %171 = vector.extract_strided_slice %126 {offsets = [0, 24], sizes = [16, 8], strides = [1, 1]} : vector<16x32xf32> to vector<16x8xf32>
    %cst_58 = arith.constant dense<0.000000e+00> : vector<8x16xf32>
    %172 = tpu.matmul %169, %170, %cst_58 {dimension_numbers = #tpu.dot_dimension_numbers<[1], [1], [0], [0], [0, 0, 1, 0], [], []>} : vector<8x8xf32>, vector<16x8xf32>, vector<8x16xf32> -> vector<8x16xf32>
    %cst_59 = arith.constant dense<0xFF800000> : vector<8xf32>
    %173 = vector.multi_reduction <maximumf>, %172, %cst_59 [1] : vector<8x16xf32> to vector<8xf32>
    %174 = vector.shape_cast %173 : vector<8xf32> to vector<8x1xf32>
    %175 = vector.broadcast %174 : vector<8x1xf32> to vector<8x16xf32>
    %176 = arith.subf %172, %175 : vector<8x16xf32>
    %177 = math.exp %176 : vector<8x16xf32>
    %cst_60 = arith.constant dense<0.000000e+00> : vector<8xf32>
    %178 = vector.multi_reduction <add>, %177, %cst_60 [1] : vector<8x16xf32> to vector<8xf32>
    %179 = vector.shape_cast %178 : vector<8xf32> to vector<8x1xf32>
    %180 = vector.broadcast %179 : vector<8x1xf32> to vector<8x16xf32>
    %181 = arith.divf %177, %180 : vector<8x16xf32>
    %cst_61 = arith.constant dense<0.000000e+00> : vector<8x8xf32>
    %182 = tpu.matmul %181, %171, %cst_61 {dimension_numbers = #tpu.dot_dimension_numbers<[1], [0], [0], [1], [0, 0, 1, 1], [], []>} : vector<8x16xf32>, vector<16x8xf32>, vector<8x8xf32> -> vector<8x8xf32>
    %183 = tpu.concatenate %140, %154, %168, %182 in 1 : vector<8x8xf32>, vector<8x8xf32>, vector<8x8xf32>, vector<8x8xf32> -> vector<8x32xf32>
    %184 = tpu.concatenate %124, %183 in 0 : vector<8x32xf32>, vector<8x32xf32> -> vector<16x32xf32>
    %cst_62 = arith.constant dense<0.000000e+00> : vector<16x32xf32>
    %185 = tpu.matmul %184, %2, %cst_62 {dimension_numbers = #tpu.dot_dimension_numbers<[1], [0], [0], [1], [0, 0, 1, 1], [], []>} : vector<16x32xf32>, vector<32x32xf32>, vector<16x32xf32> -> vector<16x32xf32>
    %186 = vector.broadcast %6 : vector<1x32xf32> to vector<16x32xf32>
    %187 = arith.addf %185, %186 : vector<16x32xf32>
    %c0_63 = arith.constant 0 : index
    %c0_64 = arith.constant 0 : index
    %188 = vector.load %arg4[%c0_63, %c0_64] : memref<16x32xf32, #tpu.memory_space<vmem>>, vector<16x32xf32>
    tpu.vector_store %arg4[%c0_63, %c0_64], %187 {strides = array<i32>} : memref<16x32xf32, #tpu.memory_space<vmem>>, vector<16x32xf32>,
    return
  }
  func.func @transform_0(%arg0: i32) -> (i32, i32) {
    %c0_i32 = arith.constant 0 : i32
    %c0_i32_0 = arith.constant 0 : i32
    %c0_i32_1 = arith.constant 0 : i32
    return %c0_i32, %c0_i32_0 : i32, i32
  }
  func.func @transform_1(%arg0: i32) -> (i32, i32) {
    %c0_i32 = arith.constant 0 : i32
    %c0_i32_0 = arith.constant 0 : i32
    %c0_i32_1 = arith.constant 0 : i32
    return %c0_i32, %c0_i32_0 : i32, i32
  }
  func.func @transform_2(%arg0: i32) -> (i32, i32) {
    %c0_i32 = arith.constant 0 : i32
    %c0_i32_0 = arith.constant 0 : i32
    %c0_i32_1 = arith.constant 0 : i32
    return %c0_i32, %c0_i32_0 : i32, i32
  }
  func.func @transform_3(%arg0: i32) -> (i32, i32) {
    %c0_i32 = arith.constant 0 : i32
    %c0_i32_0 = arith.constant 0 : i32
    %c0_i32_1 = arith.constant 0 : i32
    return %c0_i32, %c0_i32_0 : i32, i32
  }
}

</mosaic_0001>

<llo_original>
// kernel: tpu_custom_call.1
$region0: #{tpu_custom_call.1}
  #allocation0 [shape = 'u32[]', space=smem, size = 0x4, offset = 0x4, fixed_abs, tag = 'smem constant byte address 0x4 - core index']
  #allocation1 [shape = 'u32[144,128]{1,0:T(1,128)}', space=vmem, size = 0x12000, scoped, tag = 'internal scratch']
  %s0 = inlined_call_operand.hbm [shape: f32[32,32], index: 0, kind: input, shape index: {}]
  %s1 = inlined_call_operand.hbm [shape: f32[32,128], index: 1, kind: input, shape index: {}]
  %s2 = inlined_call_operand.hbm [shape: f32[10,128], index: 2, kind: input, shape index: {}]
  %s3 = inlined_call_operand.hbm [shape: f32[16,32], index: 3, kind: output, shape index: {}]
  %s4 = sld [smem:[#allocation0]]
  $region34: #{tpu_custom_call.1} parent=0
    _
  %s6 = ssub.s32 1, %s4
  %s7 = scalar_select 0, %s6, %s4
  $region1: #{tpu_custom_call.1} parent=0
    #allocation2 [shape = 'u8[16384]{0}', space=vmem, size = 0x4000, scoped, tag = 'input window, operand 0, single buffered']
    #allocation3 [shape = 's32[1]{0}', space=sflag, size = 0x4, scoped, tag = 'scoped memory for tpu_custom_call.1']
    #allocation4 [shape = 's32[1]{0}', space=sflag, size = 0x4, scoped, tag = 'scoped memory for tpu_custom_call.1']
    #allocation5 [shape = 'u8[16384]{0}', space=vmem, size = 0x4000, scoped, tag = 'input window, operand 1, single buffered']
    #allocation6 [shape = 's32[1]{0}', space=sflag, size = 0x4, scoped, tag = 'scoped memory for tpu_custom_call.1']
    #allocation7 [shape = 'u8[8192]{0}', space=vmem, size = 0x2000, scoped, tag = 'input window, operand 2, single buffered']
    #allocation8 [shape = 'u8[8192]{0}', space=vmem, size = 0x2000, scoped, tag = 'output window, operand 0, single buffered']
    %8 = vsyncpa [#allocation3], 0
    %9 = vsyncpa [#allocation6], 0
    %10 = vsyncpa [#allocation4], 0
    // Predicated region
    $region2: #{tpu_custom_call.1} parent=1 // pred_check
      _
    $region3: #{tpu_custom_call.1} parent=1 // pred_check_branch
      %12 = sbr.rel (0) target = $region5
    $region4: #{tpu_custom_call.1} parent=1 // pred_region
      %s14 = ssub.s32 512, 512
      %15 = vsyncadd [#allocation3], %s14
      %s16 = sshll.u32 [#allocation2], 4
      %s17 = int_to_ptr.vmem [resolvable:$true] %s16
      %22 = dma.hbm_to_vmem [thread:$0]  %s0, 512, %s17, [#allocation3], 128, 128, 8
    $region5: #{tpu_custom_call.1} parent=1 // pred_fallthru
      _
    // Predicated region
    $region6: #{tpu_custom_call.1} parent=1 // pred_check
      _
    $region7: #{tpu_custom_call.1} parent=1 // pred_check_branch
      %24 = sbr.rel (0) target = $region9
    $region8: #{tpu_custom_call.1} parent=1 // pred_region
      %s26 = ssub.s32 512, 512
      %27 = vsyncadd [#allocation6], %s26
      %s28 = sshll.u32 [#allocation5], 4
      %s29 = int_to_ptr.vmem [resolvable:$true] %s28
      %34 = dma.hbm_to_vmem [thread:$0]  %s1, 512, %s29, [#allocation6], 128, 128, 8
    $region9: #{tpu_custom_call.1} parent=1 // pred_fallthru
      _
    // Predicated region
    $region10: #{tpu_custom_call.1} parent=1 // pred_check
      _
    $region11: #{tpu_custom_call.1} parent=1 // pred_check_branch
      %36 = sbr.rel (0) target = $region13
    $region12: #{tpu_custom_call.1} parent=1 // pred_region
      %s38 = ssub.s32 256, 256
      %39 = vsyncadd [#allocation6], %s38
      %s40 = sshll.u32 [#allocation7], 4
      %s41 = int_to_ptr.vmem [resolvable:$true] %s40
      %46 = dma.hbm_to_vmem [thread:$0]  %s2, 256, %s41, [#allocation6], 128, 128, 8
    $region13: #{tpu_custom_call.1} parent=1 // pred_fallthru
      _
    // Predicated region
    $region14: #{tpu_custom_call.1} parent=1 // pred_check
      _
    $region15: #{tpu_custom_call.1} parent=1 // pred_check_branch
      %48 = sbr.rel (0) target = $region17
    $region16: #{tpu_custom_call.1} parent=1 // pred_region
      %49 = dma.done [#allocation3], 512
    $region17: #{tpu_custom_call.1} parent=1 // pred_fallthru
      _
    // Predicated region
    $region18: #{tpu_custom_call.1} parent=1 // pred_check
      _
    $region19: #{tpu_custom_call.1} parent=1 // pred_check_branch
      %51 = sbr.rel (0) target = $region21
    $region20: #{tpu_custom_call.1} parent=1 // pred_region
      %52 = dma.done [#allocation6], 512
    $region21: #{tpu_custom_call.1} parent=1 // pred_fallthru
      _
    // Predicated region
    $region22: #{tpu_custom_call.1} parent=1 // pred_check
      _
    $region23: #{tpu_custom_call.1} parent=1 // pred_check_branch
      %54 = sbr.rel (0) target = $region25
    $region24: #{tpu_custom_call.1} parent=1 // pred_region
      %55 = dma.done [#allocation6], 256
    $region25: #{tpu_custom_call.1} parent=1 // pred_fallthru
      _
    %v56 = vld [vmem:[#allocation5] sm:$0xff]
    %v57 = vld [vmem:[#allocation5 + $0x8] sm:$0xff]
    %v58 = vld [vmem:[#allocation5 + $0x10] sm:$0xff]
    %v59 = vld [vmem:[#allocation5 + $0x18] sm:$0xff]
    %v60 = vld [vmem:[#allocation7] sm:$0xff]
    %v61 = vld [vmem:[#allocation7 + $0x8] sm:$0x1]
    %v62 = vld [vmem:[#allocation7 + $0x9] sm:$0x1]
    %v63 = vld [vmem:[#allocation2] sm:$0xff]
    %v64 = vld [vmem:[#allocation2 + $0x8] sm:$0xff]
    %v65 = vld [vmem:[#allocation2 + $0x10] sm:$0xff]
    %v66 = vld [vmem:[#allocation2 + $0x18] sm:$0xff]
    %vm67 = vcmask 261120
    %v68 = vsel %vm67, %v63, 0.0
    %69 = vadd.xlane.f32.xlu0 %v68
    %v70 = vpop.xlane.xlu0 %69
    %v71 = vsel %vm67, %v64, 0.0
    %72 = vadd.xlane.f32.xlu0 %v71
    %v73 = vpop.xlane.xlu0 %72
    %v74 = vsel %vm67, %v65, 0.0
    %75 = vadd.xlane.f32.xlu0 %v74
    %v76 = vpop.xlane.xlu0 %75
    %v77 = vsel %vm67, %v66, 0.0
    %78 = vadd.xlane.f32.xlu0 %v77
    %v79 = vpop.xlane.xlu0 %78
    %v80 = vrcp.pop 32.0
    %v81 = vmul.f32 %v70, %v80
    %v82 = vmul.f32 %v73, %v80
    %v83 = vmul.f32 %v76, %v80
    %v84 = vmul.f32 %v79, %v80
    %v85 = vsub.f32 %v63, %v81
    %v86 = vsub.f32 %v64, %v82
    %v87 = vsub.f32 %v65, %v83
    %v88 = vsub.f32 %v66, %v84
    %v89 = vmul.f32 %v85, %v85
    %v90 = vmul.f32 %v86, %v86
    %v91 = vmul.f32 %v87, %v87
    %v92 = vmul.f32 %v88, %v88
    %v93 = vsel %vm67, %v89, 0.0
    %94 = vadd.xlane.f32.xlu0 %v93
    %v95 = vpop.xlane.xlu0 %94
    %v96 = vsel %vm67, %v90, 0.0
    %97 = vadd.xlane.f32.xlu0 %v96
    %v98 = vpop.xlane.xlu0 %97
    %v99 = vsel %vm67, %v91, 0.0
    %100 = vadd.xlane.f32.xlu0 %v99
    %v101 = vpop.xlane.xlu0 %100
    %v102 = vsel %vm67, %v92, 0.0
    %103 = vadd.xlane.f32.xlu0 %v102
    %v104 = vpop.xlane.xlu0 %103
    %v105 = vmul.f32 %v95, %v80
    %v106 = vmul.f32 %v98, %v80
    %v107 = vmul.f32 %v101, %v80
    %v108 = vmul.f32 %v104, %v80
    %v109 = vadd.f32 %v105, 1e-05
    %v110 = vadd.f32 %v106, 1e-05
    %v111 = vadd.f32 %v107, 1e-05
    %v112 = vadd.f32 %v108, 1e-05
    %v113 = vrsqrt.pop %v109
    %v114 = vrsqrt.pop %v110
    %v115 = vrsqrt.pop %v111
    %v116 = vrsqrt.pop %v112
    %v117 = vmul.f32 %v85, %v113
    %v118 = vmul.f32 %v86, %v114
    %v119 = vmul.f32 %v87, %v115
    %v120 = vmul.f32 %v88, %v116
    %v121 = vlaneseq
    %v122 = vshrl.u32 %v121, 7
    %v123 = vsub.s32 0, %v122
    %v124 = vrot.slane %v62, %v123
    %126 = vrot.lane.b32.xlu0 %v124, 64
    %v127 = vpop.permute.xlu0 %126
    %v129 = vmul.f32 %v117, %v127
    %v130 = vmul.f32 %v118, %v127
    %v131 = vmul.f32 %v119, %v127
    %v132 = vmul.f32 %v120, %v127
    %133 = vrot.lane.b32.xlu0 %v124, 32
    %v134 = vpop.permute.xlu0 %133
    %v136 = vadd.f32 %v129, %v134
    %v137 = vadd.f32 %v130, %v134
    %v138 = vadd.f32 %v131, %v134
    %v139 = vadd.f32 %v132, %v134
    %v140 = vsel %vm67, %v60, 0.0
    %141 = vadd.xlane.f32.xlu0 %v140
    %v142 = vpop.xlane.xlu0 %141
    %v143 = vmul.f32 %v142, %v80
    %v144 = vsub.f32 %v60, %v143
    %v145 = vmul.f32 %v144, %v144
    %v146 = vsel %vm67, %v145, 0.0
    %147 = vadd.xlane.f32.xlu0 %v146
    %v148 = vpop.xlane.xlu0 %147
    %v149 = vmul.f32 %v148, %v80
    %v150 = vadd.f32 %v149, 1e-05
    %v151 = vrsqrt.pop %v150
    %v152 = vmul.f32 %v144, %v151
    %v153 = vmul.f32 %v152, %v124
    %154 = vrot.lane.b32.xlu0 %v124, 96
    %v155 = vpop.permute.xlu0 %154
    %v157 = vadd.f32 %v153, %v155
    %v158 = vlaneseq
    %v159 = vshrl.u32 %v158, 7
    %v160 = vsub.s32 0, %v159
    %v161 = vrot.slane %v61, %v160
    %v163 = vsel %vm67, %v157, 0
    %165 = vmatprep.subr.mxu0 0.0
    %166 = vmatpush1.msra.mxu0 0.0
    %167 = vmatprep.subr.mxu0 0.0
    %168 = vmatpush1.msra.mxu0 0.0
    %169 = vmatprep.subr.mxu0 0.0
    %170 = vmatpush1.msra.mxu0 0.0
    %171 = vmatprep.subr.mxu0 0.0
    %172 = vmatpush1.msra.mxu0 0.0
    %173 = vmatprep.subr.mxu0 0.0
    %174 = vmatpush1.msra.mxu0 0.0
    %175 = vmatprep.subr.mxu0 0.0
    %176 = vmatpush1.msra.mxu0 0.0
    %177 = vmatprep.subr.mxu0 0.0
    %178 = vmatpush1.msra.mxu0 0.0
    %179 = vmatprep.subr.mxu0 0.0
    %180 = vmatpush1.msra.mxu0 0.0
    %181 = vmatprep.subr.mxu0 0.0
    %182 = vmatpush1.msra.mxu0 0.0
    %183 = vmatprep.subr.mxu0 0.0
    %184 = vmatpush1.msra.mxu0 0.0
    %185 = vmatprep.subr.mxu0 0.0
    %186 = vmatpush1.msra.mxu0 0.0
    %187 = vmatprep.subr.mxu0 0.0
    %188 = vmatpush1.msra.mxu0 0.0
    %189 = vmatprep.subr.mxu0 0.0
    %190 = vmatpush1.msra.mxu0 %v59
    %191 = vmatprep.subr.mxu0 0.0
    %192 = vmatpush1.msra.mxu0 %v58
    %193 = vmatprep.subr.mxu0 0.0
    %194 = vmatpush1.msra.mxu0 %v57
    %195 = vmatprep.subr.mxu0 0.0
    %196 = vmatpush1.msra.mxu0 %v56
    %197 = vmatprep.subr.mxu0 0.0
    %198 = vmatpush2.msra.mxu0 0.0
    %199 = vmatprep.subr.mxu0 0.0
    %200 = vmatpush2.msra.mxu0 0.0
    %201 = vmatprep.subr.mxu0 0.0
    %202 = vmatpush2.msra.mxu0 0.0
    %203 = vmatprep.subr.mxu0 0.0
    %204 = vmatpush2.msra.mxu0 0.0
    %205 = vmatprep.subr.mxu0 0.0
    %206 = vmatpush2.msra.mxu0 0.0
    %207 = vmatprep.subr.mxu0 0.0
    %208 = vmatpush2.msra.mxu0 0.0
    %209 = vmatprep.subr.mxu0 0.0
    %210 = vmatpush2.msra.mxu0 0.0
    %211 = vmatprep.subr.mxu0 0.0
    %212 = vmatpush2.msra.mxu0 0.0
    %213 = vmatprep.subr.mxu0 0.0
    %214 = vmatpush2.msra.mxu0 0.0
    %215 = vmatprep.subr.mxu0 0.0
    %216 = vmatpush2.msra.mxu0 0.0
    %217 = vmatprep.subr.mxu0 0.0
    %218 = vmatpush2.msra.mxu0 0.0
    %219 = vmatprep.subr.mxu0 0.0
    %220 = vmatpush2.msra.mxu0 0.0
    %221 = vmatprep.subr.mxu0 0.0
    %222 = vmatpush2.msra.mxu0 0.0
    %223 = vmatprep.subr.mxu0 0.0
    %224 = vmatpush2.msra.mxu0 0.0
    %225 = vmatprep.subr.mxu0 0.0
    %226 = vmatpush2.msra.mxu0 0.0
    %227 = vmatprep.subr.mxu0 0.0
    %228 = vmatpush2.msra.mxu0 0.0
    %229 = vmatprep.mubr.f32.mxu0 0.0
    %230 = vmatmul.mubr.f32.gmra.mxu0 %v163
    %v231 = vpop.f32.mrf.mxu0
    %v232 = vadd.f32 %v161, %v231
    %v233 = vpop.f32.mrf.mxu0
    %234 = vdwg.mxu0
    %v235 = vmul.f32 %v232, 0.35355338
    %240 = vrot.lane.b32.xlu0 %v56, 96
    %v241 = vpop.permute.xlu0 %240
    %242 = vrot.lane.b32.xlu0 %v57, 96
    %v243 = vpop.permute.xlu0 %242
    %244 = vrot.lane.b32.xlu0 %v58, 96
    %v245 = vpop.permute.xlu0 %244
    %246 = vrot.lane.b32.xlu0 %v59, 96
    %v247 = vpop.permute.xlu0 %246
    %253 = vrot.lane.b32.xlu0 %v161, 96
    %v254 = vpop.permute.xlu0 %253
    %v257 = vsel %vm67, %v136, 0
    %v260 = vsel %vm67, %v137, 0
    %v263 = vsel %vm67, %v138, 0
    %v266 = vsel %vm67, %v139, 0
    %268 = vmatprep.subr.mxu0 0.0
    %269 = vmatpush1.msra.mxu0 0.0
    %270 = vmatprep.subr.mxu0 0.0
    %271 = vmatpush1.msra.mxu0 0.0
    %272 = vmatprep.subr.mxu0 0.0
    %273 = vmatpush1.msra.mxu0 0.0
    %274 = vmatprep.subr.mxu0 0.0
    %275 = vmatpush1.msra.mxu0 0.0
    %276 = vmatprep.subr.mxu0 0.0
    %277 = vmatpush1.msra.mxu0 0.0
    %278 = vmatprep.subr.mxu0 0.0
    %279 = vmatpush1.msra.mxu0 0.0
    %280 = vmatprep.subr.mxu0 0.0
    %281 = vmatpush1.msra.mxu0 0.0
    %282 = vmatprep.subr.mxu0 0.0
    %283 = vmatpush1.msra.mxu0 0.0
    %284 = vmatprep.subr.mxu0 0.0
    %285 = vmatpush1.msra.mxu0 0.0
    %286 = vmatprep.subr.mxu0 0.0
    %287 = vmatpush1.msra.mxu0 0.0
    %288 = vmatprep.subr.mxu0 0.0
    %289 = vmatpush1.msra.mxu0 0.0
    %290 = vmatprep.subr.mxu0 0.0
    %291 = vmatpush1.msra.mxu0 0.0
    %292 = vmatprep.subr.mxu0 0.0
    %293 = vmatpush1.msra.mxu0 %v247
    %294 = vmatprep.subr.mxu0 0.0
    %295 = vmatpush1.msra.mxu0 %v245
    %296 = vmatprep.subr.mxu0 0.0
    %297 = vmatpush1.msra.mxu0 %v243
    %298 = vmatprep.subr.mxu0 0.0
    %299 = vmatpush1.msra.mxu0 %v241
    %300 = vmatprep.subr.mxu0 0.0
    %301 = vmatpush2.msra.mxu0 0.0
    %302 = vmatprep.subr.mxu0 0.0
    %303 = vmatpush2.msra.mxu0 0.0
    %304 = vmatprep.subr.mxu0 0.0
    %305 = vmatpush2.msra.mxu0 0.0
    %306 = vmatprep.subr.mxu0 0.0
    %307 = vmatpush2.msra.mxu0 0.0
    %308 = vmatprep.subr.mxu0 0.0
    %309 = vmatpush2.msra.mxu0 0.0
    %310 = vmatprep.subr.mxu0 0.0
    %311 = vmatpush2.msra.mxu0 0.0
    %312 = vmatprep.subr.mxu0 0.0
    %313 = vmatpush2.msra.mxu0 0.0
    %314 = vmatprep.subr.mxu0 0.0
    %315 = vmatpush2.msra.mxu0 0.0
    %316 = vmatprep.subr.mxu0 0.0
    %317 = vmatpush2.msra.mxu0 0.0
    %318 = vmatprep.subr.mxu0 0.0
    %319 = vmatpush2.msra.mxu0 0.0
    %320 = vmatprep.subr.mxu0 0.0
    %321 = vmatpush2.msra.mxu0 0.0
    %322 = vmatprep.subr.mxu0 0.0
    %323 = vmatpush2.msra.mxu0 0.0
    %324 = vmatprep.subr.mxu0 0.0
    %325 = vmatpush2.msra.mxu0 0.0
    %326 = vmatprep.subr.mxu0 0.0
    %327 = vmatpush2.msra.mxu0 0.0
    %328 = vmatprep.subr.mxu0 0.0
    %329 = vmatpush2.msra.mxu0 0.0
    %330 = vmatprep.subr.mxu0 0.0
    %331 = vmatpush2.msra.mxu0 0.0
    %332 = vmatprep.mubr.f32.mxu0 0.0
    %333 = vmatmul.mubr.f32.gmra.mxu0 %v257
    %v334 = vpop.f32.mrf.mxu0
    %v335 = vadd.f32 %v254, %v334
    %v336 = vpop.f32.mrf.mxu0
    %337 = vmatprep.mubr.f32.mxu0 0.0
    %338 = vmatmul.mubr.f32.gmra.mxu0 %v260
    %v339 = vpop.f32.mrf.mxu0
    %v340 = vadd.f32 %v254, %v339
    %v341 = vpop.f32.mrf.mxu0
    %342 = vmatprep.mubr.f32.mxu0 0.0
    %343 = vmatmul.mubr.f32.gmra.mxu0 %v263
    %v344 = vpop.f32.mrf.mxu0
    %v345 = vadd.f32 %v254, %v344
    %v346 = vpop.f32.mrf.mxu0
    %347 = vmatprep.mubr.f32.mxu0 0.0
    %348 = vmatmul.mubr.f32.gmra.mxu0 %v266
    %v349 = vpop.f32.mrf.mxu0
    %v350 = vadd.f32 %v254, %v349
    %v351 = vpop.f32.mrf.mxu0
    %352 = vdwg.mxu0
    %vm353 = vcmask 64512
    %v355 = vsel %vm353, %v235, 0
    %v358 = vsel %vm353, %v335, 0
    %v361 = vsel %vm353, %v340, 0
    %363 = vmatprep.subr.mxu0 0.0
    %364 = vmatpush1.xpose.msra.mxu0 0.0
    %365 = vmatprep.subr.mxu0 0.0
    %366 = vmatpush1.xpose.msra.mxu0 0.0
    %367 = vmatprep.subr.mxu0 0.0
    %368 = vmatpush1.xpose.msra.mxu0 0.0
    %369 = vmatprep.subr.mxu0 0.0
    %370 = vmatpush1.xpose.msra.mxu0 0.0
    %371 = vmatprep.subr.mxu0 0.0
    %372 = vmatpush1.xpose.msra.mxu0 0.0
    %373 = vmatprep.subr.mxu0 0.0
    %374 = vmatpush1.xpose.msra.mxu0 0.0
    %375 = vmatprep.subr.mxu0 0.0
    %376 = vmatpush1.xpose.msra.mxu0 0.0
    %377 = vmatprep.subr.mxu0 0.0
    %378 = vmatpush1.xpose.msra.mxu0 0.0
    %379 = vmatprep.subr.mxu0 0.0
    %380 = vmatpush1.xpose.msra.mxu0 0.0
    %381 = vmatprep.subr.mxu0 0.0
    %382 = vmatpush1.xpose.msra.mxu0 0.0
    %383 = vmatprep.subr.mxu0 0.0
    %384 = vmatpush1.xpose.msra.mxu0 0.0
    %385 = vmatprep.subr.mxu0 0.0
    %386 = vmatpush1.xpose.msra.mxu0 0.0
    %387 = vmatprep.subr.mxu0 0.0
    %388 = vmatpush1.xpose.msra.mxu0 0.0
    %389 = vmatprep.subr.mxu0 0.0
    %390 = vmatpush1.xpose.msra.mxu0 0.0
    %391 = vmatprep.subr.mxu0 0.0
    %392 = vmatpush1.xpose.msra.mxu0 %v361
    %393 = vmatprep.subr.mxu0 0.0
    %394 = vmatpush1.xpose.msra.mxu0 %v358
    %395 = vmatprep.subr.mxu0 0.0
    %396 = vmatpush2.xpose.msra.mxu0 0.0
    %397 = vmatprep.subr.mxu0 0.0
    %398 = vmatpush2.xpose.msra.mxu0 0.0
    %399 = vmatprep.subr.mxu0 0.0
    %400 = vmatpush2.xpose.msra.mxu0 0.0
    %401 = vmatprep.subr.mxu0 0.0
    %402 = vmatpush2.xpose.msra.mxu0 0.0
    %403 = vmatprep.subr.mxu0 0.0
    %404 = vmatpush2.xpose.msra.mxu0 0.0
    %405 = vmatprep.subr.mxu0 0.0
    %406 = vmatpush2.xpose.msra.mxu0 0.0
    %407 = vmatprep.subr.mxu0 0.0
    %408 = vmatpush2.xpose.msra.mxu0 0.0
    %409 = vmatprep.subr.mxu0 0.0
    %410 = vmatpush2.xpose.msra.mxu0 0.0
    %411 = vmatprep.subr.mxu0 0.0
    %412 = vmatpush2.xpose.msra.mxu0 0.0
    %413 = vmatprep.subr.mxu0 0.0
    %414 = vmatpush2.xpose.msra.mxu0 0.0
    %415 = vmatprep.subr.mxu0 0.0
    %416 = vmatpush2.xpose.msra.mxu0 0.0
    %417 = vmatprep.subr.mxu0 0.0
    %418 = vmatpush2.xpose.msra.mxu0 0.0
    %419 = vmatprep.subr.mxu0 0.0
    %420 = vmatpush2.xpose.msra.mxu0 0.0
    %421 = vmatprep.subr.mxu0 0.0
    %422 = vmatpush2.xpose.msra.mxu0 0.0
    %423 = vmatprep.subr.mxu0 0.0
    %424 = vmatpush2.xpose.msra.mxu0 0.0
    %425 = vmatprep.subr.mxu0 0.0
    %426 = vmatpush2.xpose.msra.mxu0 0.0
    %427 = vmatprep.mubr.f32.mxu0 0.0
    %428 = vmatmul.mubr.f32.gmra.mxu0 %v355
    %v429 = vpop.f32.mrf.mxu0
    %v430 = vadd.f32 0.0, %v429
    %v431 = vpop.f32.mrf.mxu0
    %432 = vdwg.mxu0
    %vm433 = vcmask 130048
    %v434 = vsel %vm433, %v430, -inf
    %435 = vmax.xlane.f32.xlu0 %v434
    %v436 = vpop.xlane.xlu0 %435
    %v437 = vsub.f32 %v430, %v436
    %v438 = vmul.f32 %v437, 1.442695
    %v439 = vpow.pop %v438
    %v440 = vsel %vm433, %v439, 0.0
    %441 = vadd.xlane.f32.xlu0 %v440
    %v442 = vpop.xlane.xlu0 %441
    %v443 = vrcp.pop %v442
    %v444 = vmul.f32 %v439, %v443
    %445 = vrot.lane.b32.xlu0 %v335, 96
    %v446 = vpop.permute.xlu0 %445
    %447 = vrot.lane.b32.xlu0 %v340, 96
    %v448 = vpop.permute.xlu0 %447
    %v452 = vsel %vm433, %v444, 0
    %454 = vmatprep.subr.mxu0 0.0
    %455 = vmatpush1.msra.mxu0 0.0
    %456 = vmatprep.subr.mxu0 0.0
    %457 = vmatpush1.msra.mxu0 0.0
    %458 = vmatprep.subr.mxu0 0.0
    %459 = vmatpush1.msra.mxu0 0.0
    %460 = vmatprep.subr.mxu0 0.0
    %461 = vmatpush1.msra.mxu0 0.0
    %462 = vmatprep.subr.mxu0 0.0
    %463 = vmatpush1.msra.mxu0 0.0
    %464 = vmatprep.subr.mxu0 0.0
    %465 = vmatpush1.msra.mxu0 0.0
    %466 = vmatprep.subr.mxu0 0.0
    %467 = vmatpush1.msra.mxu0 0.0
    %468 = vmatprep.subr.mxu0 0.0
    %469 = vmatpush1.msra.mxu0 0.0
    %470 = vmatprep.subr.mxu0 0.0
    %471 = vmatpush1.msra.mxu0 0.0
    %472 = vmatprep.subr.mxu0 0.0
    %473 = vmatpush1.msra.mxu0 0.0
    %474 = vmatprep.subr.mxu0 0.0
    %475 = vmatpush1.msra.mxu0 0.0
    %476 = vmatprep.subr.mxu0 0.0
    %477 = vmatpush1.msra.mxu0 0.0
    %478 = vmatprep.subr.mxu0 0.0
    %479 = vmatpush1.msra.mxu0 0.0
    %480 = vmatprep.subr.mxu0 0.0
    %481 = vmatpush1.msra.mxu0 0.0
    %482 = vmatprep.subr.mxu0 0.0
    %483 = vmatpush1.msra.mxu0 %v448
    %484 = vmatprep.subr.mxu0 0.0
    %485 = vmatpush1.msra.mxu0 %v446
    %486 = vmatprep.subr.mxu0 0.0
    %487 = vmatpush2.msra.mxu0 0.0
    %488 = vmatprep.subr.mxu0 0.0
    %489 = vmatpush2.msra.mxu0 0.0
    %490 = vmatprep.subr.mxu0 0.0
    %491 = vmatpush2.msra.mxu0 0.0
    %492 = vmatprep.subr.mxu0 0.0
    %493 = vmatpush2.msra.mxu0 0.0
    %494 = vmatprep.subr.mxu0 0.0
    %495 = vmatpush2.msra.mxu0 0.0
    %496 = vmatprep.subr.mxu0 0.0
    %497 = vmatpush2.msra.mxu0 0.0
    %498 = vmatprep.subr.mxu0 0.0
    %499 = vmatpush2.msra.mxu0 0.0
    %500 = vmatprep.subr.mxu0 0.0
    %501 = vmatpush2.msra.mxu0 0.0
    %502 = vmatprep.subr.mxu0 0.0
    %503 = vmatpush2.msra.mxu0 0.0
    %504 = vmatprep.subr.mxu0 0.0
    %505 = vmatpush2.msra.mxu0 0.0
    %506 = vmatprep.subr.mxu0 0.0
    %507 = vmatpush2.msra.mxu0 0.0
    %508 = vmatprep.subr.mxu0 0.0
    %509 = vmatpush2.msra.mxu0 0.0
    %510 = vmatprep.subr.mxu0 0.0
    %511 = vmatpush2.msra.mxu0 0.0
    %512 = vmatprep.subr.mxu0 0.0
    %513 = vmatpush2.msra.mxu0 0.0
    %514 = vmatprep.subr.mxu0 0.0
    %515 = vmatpush2.msra.mxu0 0.0
    %516 = vmatprep.subr.mxu0 0.0
    %517 = vmatpush2.msra.mxu0 0.0
    %518 = vmatprep.mubr.f32.mxu0 0.0
    %519 = vmatmul.mubr.f32.gmra.mxu0 %v452
    %v520 = vpop.f32.mrf.mxu0
    %v521 = vadd.f32 0.0, %v520
    %v522 = vpop.f32.mrf.mxu0
    %523 = vdwg.mxu0
    %524 = vrot.lane.b32.xlu0 %v235, 120
    %v525 = vpop.permute.xlu0 %524
    %526 = vrot.lane.b32.xlu0 %v335, 120
    %v527 = vpop.permute.xlu0 %526
    %528 = vrot.lane.b32.xlu0 %v340, 120
    %v529 = vpop.permute.xlu0 %528
    %v530 = vsel %vm353, %v525, 0
    %v532 = vsel %vm353, %v527, 0
    %v534 = vsel %vm353, %v529, 0
    %536 = vmatprep.subr.mxu0 0.0
    %537 = vmatpush1.xpose.msra.mxu0 0.0
    %538 = vmatprep.subr.mxu0 0.0
    %539 = vmatpush1.xpose.msra.mxu0 0.0
    %540 = vmatprep.subr.mxu0 0.0
    %541 = vmatpush1.xpose.msra.mxu0 0.0
    %542 = vmatprep.subr.mxu0 0.0
    %543 = vmatpush1.xpose.msra.mxu0 0.0
    %544 = vmatprep.subr.mxu0 0.0
    %545 = vmatpush1.xpose.msra.mxu0 0.0
    %546 = vmatprep.subr.mxu0 0.0
    %547 = vmatpush1.xpose.msra.mxu0 0.0
    %548 = vmatprep.subr.mxu0 0.0
    %549 = vmatpush1.xpose.msra.mxu0 0.0
    %550 = vmatprep.subr.mxu0 0.0
    %551 = vmatpush1.xpose.msra.mxu0 0.0
    %552 = vmatprep.subr.mxu0 0.0
    %553 = vmatpush1.xpose.msra.mxu0 0.0
    %554 = vmatprep.subr.mxu0 0.0
    %555 = vmatpush1.xpose.msra.mxu0 0.0
    %556 = vmatprep.subr.mxu0 0.0
    %557 = vmatpush1.xpose.msra.mxu0 0.0
    %558 = vmatprep.subr.mxu0 0.0
    %559 = vmatpush1.xpose.msra.mxu0 0.0
    %560 = vmatprep.subr.mxu0 0.0
    %561 = vmatpush1.xpose.msra.mxu0 0.0
    %562 = vmatprep.subr.mxu0 0.0
    %563 = vmatpush1.xpose.msra.mxu0 0.0
    %564 = vmatprep.subr.mxu0 0.0
    %565 = vmatpush1.xpose.msra.mxu0 %v534
    %566 = vmatprep.subr.mxu0 0.0
    %567 = vmatpush1.xpose.msra.mxu0 %v532
    %568 = vmatprep.subr.mxu0 0.0
    %569 = vmatpush2.xpose.msra.mxu0 0.0
    %570 = vmatprep.subr.mxu0 0.0
    %571 = vmatpush2.xpose.msra.mxu0 0.0
    %572 = vmatprep.subr.mxu0 0.0
    %573 = vmatpush2.xpose.msra.mxu0 0.0
    %574 = vmatprep.subr.mxu0 0.0
    %575 = vmatpush2.xpose.msra.mxu0 0.0
    %576 = vmatprep.subr.mxu0 0.0
    %577 = vmatpush2.xpose.msra.mxu0 0.0
    %578 = vmatprep.subr.mxu0 0.0
    %579 = vmatpush2.xpose.msra.mxu0 0.0
    %580 = vmatprep.subr.mxu0 0.0
    %581 = vmatpush2.xpose.msra.mxu0 0.0
    %582 = vmatprep.subr.mxu0 0.0
    %583 = vmatpush2.xpose.msra.mxu0 0.0
    %584 = vmatprep.subr.mxu0 0.0
    %585 = vmatpush2.xpose.msra.mxu0 0.0
    %586 = vmatprep.subr.mxu0 0.0
    %587 = vmatpush2.xpose.msra.mxu0 0.0
    %588 = vmatprep.subr.mxu0 0.0
    %589 = vmatpush2.xpose.msra.mxu0 0.0
    %590 = vmatprep.subr.mxu0 0.0
    %591 = vmatpush2.xpose.msra.mxu0 0.0
    %592 = vmatprep.subr.mxu0 0.0
    %593 = vmatpush2.xpose.msra.mxu0 0.0
    %594 = vmatprep.subr.mxu0 0.0
    %595 = vmatpush2.xpose.msra.mxu0 0.0
    %596 = vmatprep.subr.mxu0 0.0
    %597 = vmatpush2.xpose.msra.mxu0 0.0
    %598 = vmatprep.subr.mxu0 0.0
    %599 = vmatpush2.xpose.msra.mxu0 0.0
    %600 = vmatprep.mubr.f32.mxu0 0.0
    %601 = vmatmul.mubr.f32.gmra.mxu0 %v530
    %v602 = vpop.f32.mrf.mxu0
    %v603 = vadd.f32 0.0, %v602
    %v604 = vpop.f32.mrf.mxu0
    %605 = vdwg.mxu0
    %v606 = vsel %vm433, %v603, -inf
    %607 = vmax.xlane.f32.xlu0 %v606
    %v608 = vpop.xlane.xlu0 %607
    %v609 = vsub.f32 %v603, %v608
    %v610 = vmul.f32 %v609, 1.442695
    %v611 = vpow.pop %v610
    %v612 = vsel %vm433, %v611, 0.0
    %613 = vadd.xlane.f32.xlu0 %v612
    %v614 = vpop.xlane.xlu0 %613
    %v615 = vrcp.pop %v614
    %v616 = vmul.f32 %v611, %v615
    %617 = vrot.lane.b32.xlu0 %v335, 88
    %v618 = vpop.permute.xlu0 %617
    %619 = vrot.lane.b32.xlu0 %v340, 88
    %v620 = vpop.permute.xlu0 %619
    %v624 = vsel %vm433, %v616, 0
    %626 = vmatprep.subr.mxu0 0.0
    %627 = vmatpush1.msra.mxu0 0.0
    %628 = vmatprep.subr.mxu0 0.0
    %629 = vmatpush1.msra.mxu0 0.0
    %630 = vmatprep.subr.mxu0 0.0
    %631 = vmatpush1.msra.mxu0 0.0
    %632 = vmatprep.subr.mxu0 0.0
    %633 = vmatpush1.msra.mxu0 0.0
    %634 = vmatprep.subr.mxu0 0.0
    %635 = vmatpush1.msra.mxu0 0.0
    %636 = vmatprep.subr.mxu0 0.0
    %637 = vmatpush1.msra.mxu0 0.0
    %638 = vmatprep.subr.mxu0 0.0
    %639 = vmatpush1.msra.mxu0 0.0
    %640 = vmatprep.subr.mxu0 0.0
    %641 = vmatpush1.msra.mxu0 0.0
    %642 = vmatprep.subr.mxu0 0.0
    %643 = vmatpush1.msra.mxu0 0.0
    %644 = vmatprep.subr.mxu0 0.0
    %645 = vmatpush1.msra.mxu0 0.0
    %646 = vmatprep.subr.mxu0 0.0
    %647 = vmatpush1.msra.mxu0 0.0
    %648 = vmatprep.subr.mxu0 0.0
    %649 = vmatpush1.msra.mxu0 0.0
    %650 = vmatprep.subr.mxu0 0.0
    %651 = vmatpush1.msra.mxu0 0.0
    %652 = vmatprep.subr.mxu0 0.0
    %653 = vmatpush1.msra.mxu0 0.0
    %654 = vmatprep.subr.mxu0 0.0
    %655 = vmatpush1.msra.mxu0 %v620
    %656 = vmatprep.subr.mxu0 0.0
    %657 = vmatpush1.msra.mxu0 %v618
    %658 = vmatprep.subr.mxu0 0.0
    %659 = vmatpush2.msra.mxu0 0.0
    %660 = vmatprep.subr.mxu0 0.0
    %661 = vmatpush2.msra.mxu0 0.0
    %662 = vmatprep.subr.mxu0 0.0
    %663 = vmatpush2.msra.mxu0 0.0
    %664 = vmatprep.subr.mxu0 0.0
    %665 = vmatpush2.msra.mxu0 0.0
    %666 = vmatprep.subr.mxu0 0.0
    %667 = vmatpush2.msra.mxu0 0.0
    %668 = vmatprep.subr.mxu0 0.0
    %669 = vmatpush2.msra.mxu0 0.0
    %670 = vmatprep.subr.mxu0 0.0
    %671 = vmatpush2.msra.mxu0 0.0
    %672 = vmatprep.subr.mxu0 0.0
    %673 = vmatpush2.msra.mxu0 0.0
    %674 = vmatprep.subr.mxu0 0.0
    %675 = vmatpush2.msra.mxu0 0.0
    %676 = vmatprep.subr.mxu0 0.0
    %677 = vmatpush2.msra.mxu0 0.0
    %678 = vmatprep.subr.mxu0 0.0
    %679 = vmatpush2.msra.mxu0 0.0
    %680 = vmatprep.subr.mxu0 0.0
    %681 = vmatpush2.msra.mxu0 0.0
    %682 = vmatprep.subr.mxu0 0.0
    %683 = vmatpush2.msra.mxu0 0.0
    %684 = vmatprep.subr.mxu0 0.0
    %685 = vmatpush2.msra.mxu0 0.0
    %686 = vmatprep.subr.mxu0 0.0
    %687 = vmatpush2.msra.mxu0 0.0
    %688 = vmatprep.subr.mxu0 0.0
    %689 = vmatpush2.msra.mxu0 0.0
    %690 = vmatprep.mubr.f32.mxu0 0.0
    %691 = vmatmul.mubr.f32.gmra.mxu0 %v624
    %v692 = vpop.f32.mrf.mxu0
    %v693 = vadd.f32 0.0, %v692
    %v694 = vpop.f32.mrf.mxu0
    %695 = vdwg.mxu0
    %696 = vrot.lane.b32.xlu0 %v235, 112
    %v697 = vpop.permute.xlu0 %696
    %698 = vrot.lane.b32.xlu0 %v335, 112
    %v699 = vpop.permute.xlu0 %698
    %700 = vrot.lane.b32.xlu0 %v340, 112
    %v701 = vpop.permute.xlu0 %700
    %v702 = vsel %vm353, %v697, 0
    %v704 = vsel %vm353, %v699, 0
    %v706 = vsel %vm353, %v701, 0
    %708 = vmatprep.subr.mxu0 0.0
    %709 = vmatpush1.xpose.msra.mxu0 0.0
    %710 = vmatprep.subr.mxu0 0.0
    %711 = vmatpush1.xpose.msra.mxu0 0.0
    %712 = vmatprep.subr.mxu0 0.0
    %713 = vmatpush1.xpose.msra.mxu0 0.0
    %714 = vmatprep.subr.mxu0 0.0
    %715 = vmatpush1.xpose.msra.mxu0 0.0
    %716 = vmatprep.subr.mxu0 0.0
    %717 = vmatpush1.xpose.msra.mxu0 0.0
    %718 = vmatprep.subr.mxu0 0.0
    %719 = vmatpush1.xpose.msra.mxu0 0.0
    %720 = vmatprep.subr.mxu0 0.0
    %721 = vmatpush1.xpose.msra.mxu0 0.0
    %722 = vmatprep.subr.mxu0 0.0
    %723 = vmatpush1.xpose.msra.mxu0 0.0
    %724 = vmatprep.subr.mxu0 0.0
    %725 = vmatpush1.xpose.msra.mxu0 0.0
    %726 = vmatprep.subr.mxu0 0.0
    %727 = vmatpush1.xpose.msra.mxu0 0.0
    %728 = vmatprep.subr.mxu0 0.0
    %729 = vmatpush1.xpose.msra.mxu0 0.0
    %730 = vmatprep.subr.mxu0 0.0
    %731 = vmatpush1.xpose.msra.mxu0 0.0
    %732 = vmatprep.subr.mxu0 0.0
    %733 = vmatpush1.xpose.msra.mxu0 0.0
    %734 = vmatprep.subr.mxu0 0.0
    %735 = vmatpush1.xpose.msra.mxu0 0.0
    %736 = vmatprep.subr.mxu0 0.0
    %737 = vmatpush1.xpose.msra.mxu0 %v706
    %738 = vmatprep.subr.mxu0 0.0
    %739 = vmatpush1.xpose.msra.mxu0 %v704
    %740 = vmatprep.subr.mxu0 0.0
    %741 = vmatpush2.xpose.msra.mxu0 0.0
    %742 = vmatprep.subr.mxu0 0.0
    %743 = vmatpush2.xpose.msra.mxu0 0.0
    %744 = vmatprep.subr.mxu0 0.0
    %745 = vmatpush2.xpose.msra.mxu0 0.0
    %746 = vmatprep.subr.mxu0 0.0
    %747 = vmatpush2.xpose.msra.mxu0 0.0
    %748 = vmatprep.subr.mxu0 0.0
    %749 = vmatpush2.xpose.msra.mxu0 0.0
    %750 = vmatprep.subr.mxu0 0.0
    %751 = vmatpush2.xpose.msra.mxu0 0.0
    %752 = vmatprep.subr.mxu0 0.0
    %753 = vmatpush2.xpose.msra.mxu0 0.0
    %754 = vmatprep.subr.mxu0 0.0
    %755 = vmatpush2.xpose.msra.mxu0 0.0
    %756 = vmatprep.subr.mxu0 0.0
    %757 = vmatpush2.xpose.msra.mxu0 0.0
    %758 = vmatprep.subr.mxu0 0.0
    %759 = vmatpush2.xpose.msra.mxu0 0.0
    %760 = vmatprep.subr.mxu0 0.0
    %761 = vmatpush2.xpose.msra.mxu0 0.0
    %762 = vmatprep.subr.mxu0 0.0
    %763 = vmatpush2.xpose.msra.mxu0 0.0
    %764 = vmatprep.subr.mxu0 0.0
    %765 = vmatpush2.xpose.msra.mxu0 0.0
    %766 = vmatprep.subr.mxu0 0.0
    %767 = vmatpush2.xpose.msra.mxu0 0.0
    %768 = vmatprep.subr.mxu0 0.0
    %769 = vmatpush2.xpose.msra.mxu0 0.0
    %770 = vmatprep.subr.mxu0 0.0
    %771 = vmatpush2.xpose.msra.mxu0 0.0
    %772 = vmatprep.mubr.f32.mxu0 0.0
    %773 = vmatmul.mubr.f32.gmra.mxu0 %v702
    %v774 = vpop.f32.mrf.mxu0
    %v775 = vadd.f32 0.0, %v774
    %v776 = vpop.f32.mrf.mxu0
    %777 = vdwg.mxu0
    %v778 = vsel %vm433, %v775, -inf
    %779 = vmax.xlane.f32.xlu0 %v778
    %v780 = vpop.xlane.xlu0 %779
    %v781 = vsub.f32 %v775, %v780
    %v782 = vmul.f32 %v781, 1.442695
    %v783 = vpow.pop %v782
    %v784 = vsel %vm433, %v783, 0.0
    %785 = vadd.xlane.f32.xlu0 %v784
    %v786 = vpop.xlane.xlu0 %785
    %v787 = vrcp.pop %v786
    %v788 = vmul.f32 %v783, %v787
    %789 = vrot.lane.b32.xlu0 %v335, 80
    %v790 = vpop.permute.xlu0 %789
    %791 = vrot.lane.b32.xlu0 %v340, 80
    %v792 = vpop.permute.xlu0 %791
    %v796 = vsel %vm433, %v788, 0
    %798 = vmatprep.subr.mxu0 0.0
    %799 = vmatpush1.msra.mxu0 0.0
    %800 = vmatprep.subr.mxu0 0.0
    %801 = vmatpush1.msra.mxu0 0.0
    %802 = vmatprep.subr.mxu0 0.0
    %803 = vmatpush1.msra.mxu0 0.0
    %804 = vmatprep.subr.mxu0 0.0
    %805 = vmatpush1.msra.mxu0 0.0
    %806 = vmatprep.subr.mxu0 0.0
    %807 = vmatpush1.msra.mxu0 0.0
    %808 = vmatprep.subr.mxu0 0.0
    %809 = vmatpush1.msra.mxu0 0.0
    %810 = vmatprep.subr.mxu0 0.0
    %811 = vmatpush1.msra.mxu0 0.0
    %812 = vmatprep.subr.mxu0 0.0
    %813 = vmatpush1.msra.mxu0 0.0
    %814 = vmatprep.subr.mxu0 0.0
    %815 = vmatpush1.msra.mxu0 0.0
    %816 = vmatprep.subr.mxu0 0.0
    %817 = vmatpush1.msra.mxu0 0.0
    %818 = vmatprep.subr.mxu0 0.0
    %819 = vmatpush1.msra.mxu0 0.0
    %820 = vmatprep.subr.mxu0 0.0
    %821 = vmatpush1.msra.mxu0 0.0
    %822 = vmatprep.subr.mxu0 0.0
    %823 = vmatpush1.msra.mxu0 0.0
    %824 = vmatprep.subr.mxu0 0.0
    %825 = vmatpush1.msra.mxu0 0.0
    %826 = vmatprep.subr.mxu0 0.0
    %827 = vmatpush1.msra.mxu0 %v792
    %828 = vmatprep.subr.mxu0 0.0
    %829 = vmatpush1.msra.mxu0 %v790
    %830 = vmatprep.subr.mxu0 0.0
    %831 = vmatpush2.msra.mxu0 0.0
    %832 = vmatprep.subr.mxu0 0.0
    %833 = vmatpush2.msra.mxu0 0.0
    %834 = vmatprep.subr.mxu0 0.0
    %835 = vmatpush2.msra.mxu0 0.0
    %836 = vmatprep.subr.mxu0 0.0
    %837 = vmatpush2.msra.mxu0 0.0
    %838 = vmatprep.subr.mxu0 0.0
    %839 = vmatpush2.msra.mxu0 0.0
    %840 = vmatprep.subr.mxu0 0.0
    %841 = vmatpush2.msra.mxu0 0.0
    %842 = vmatprep.subr.mxu0 0.0
    %843 = vmatpush2.msra.mxu0 0.0
    %844 = vmatprep.subr.mxu0 0.0
    %845 = vmatpush2.msra.mxu0 0.0
    %846 = vmatprep.subr.mxu0 0.0
    %847 = vmatpush2.msra.mxu0 0.0
    %848 = vmatprep.subr.mxu0 0.0
    %849 = vmatpush2.msra.mxu0 0.0
    %850 = vmatprep.subr.mxu0 0.0
    %851 = vmatpush2.msra.mxu0 0.0
    %852 = vmatprep.subr.mxu0 0.0
    %853 = vmatpush2.msra.mxu0 0.0
    %854 = vmatprep.subr.mxu0 0.0
    %855 = vmatpush2.msra.mxu0 0.0
    %856 = vmatprep.subr.mxu0 0.0
    %857 = vmatpush2.msra.mxu0 0.0
    %858 = vmatprep.subr.mxu0 0.0
    %859 = vmatpush2.msra.mxu0 0.0
    %860 = vmatprep.subr.mxu0 0.0
    %861 = vmatpush2.msra.mxu0 0.0
    %862 = vmatprep.mubr.f32.mxu0 0.0
    %863 = vmatmul.mubr.f32.gmra.mxu0 %v796
    %v864 = vpop.f32.mrf.mxu0
    %v865 = vadd.f32 0.0, %v864
    %v866 = vpop.f32.mrf.mxu0
    %867 = vdwg.mxu0
    %868 = vrot.lane.b32.xlu0 %v235, 104
    %v869 = vpop.permute.xlu0 %868
    %870 = vrot.lane.b32.xlu0 %v335, 104
    %v871 = vpop.permute.xlu0 %870
    %872 = vrot.lane.b32.xlu0 %v340, 104
    %v873 = vpop.permute.xlu0 %872
    %v874 = vsel %vm353, %v869, 0
    %v876 = vsel %vm353, %v871, 0
    %v878 = vsel %vm353, %v873, 0
    %880 = vmatprep.subr.mxu0 0.0
    %881 = vmatpush1.xpose.msra.mxu0 0.0
    %882 = vmatprep.subr.mxu0 0.0
    %883 = vmatpush1.xpose.msra.mxu0 0.0
    %884 = vmatprep.subr.mxu0 0.0
    %885 = vmatpush1.xpose.msra.mxu0 0.0
    %886 = vmatprep.subr.mxu0 0.0
    %887 = vmatpush1.xpose.msra.mxu0 0.0
    %888 = vmatprep.subr.mxu0 0.0
    %889 = vmatpush1.xpose.msra.mxu0 0.0
    %890 = vmatprep.subr.mxu0 0.0
    %891 = vmatpush1.xpose.msra.mxu0 0.0
    %892 = vmatprep.subr.mxu0 0.0
    %893 = vmatpush1.xpose.msra.mxu0 0.0
    %894 = vmatprep.subr.mxu0 0.0
    %895 = vmatpush1.xpose.msra.mxu0 0.0
    %896 = vmatprep.subr.mxu0 0.0
    %897 = vmatpush1.xpose.msra.mxu0 0.0
    %898 = vmatprep.subr.mxu0 0.0
    %899 = vmatpush1.xpose.msra.mxu0 0.0
    %900 = vmatprep.subr.mxu0 0.0
    %901 = vmatpush1.xpose.msra.mxu0 0.0
    %902 = vmatprep.subr.mxu0 0.0
    %903 = vmatpush1.xpose.msra.mxu0 0.0
    %904 = vmatprep.subr.mxu0 0.0
    %905 = vmatpush1.xpose.msra.mxu0 0.0
    %906 = vmatprep.subr.mxu0 0.0
    %907 = vmatpush1.xpose.msra.mxu0 0.0
    %908 = vmatprep.subr.mxu0 0.0
    %909 = vmatpush1.xpose.msra.mxu0 %v878
    %910 = vmatprep.subr.mxu0 0.0
    %911 = vmatpush1.xpose.msra.mxu0 %v876
    %912 = vmatprep.subr.mxu0 0.0
    %913 = vmatpush2.xpose.msra.mxu0 0.0
    %914 = vmatprep.subr.mxu0 0.0
    %915 = vmatpush2.xpose.msra.mxu0 0.0
    %916 = vmatprep.subr.mxu0 0.0
    %917 = vmatpush2.xpose.msra.mxu0 0.0
    %918 = vmatprep.subr.mxu0 0.0
    %919 = vmatpush2.xpose.msra.mxu0 0.0
    %920 = vmatprep.subr.mxu0 0.0
    %921 = vmatpush2.xpose.msra.mxu0 0.0
    %922 = vmatprep.subr.mxu0 0.0
    %923 = vmatpush2.xpose.msra.mxu0 0.0
    %924 = vmatprep.subr.mxu0 0.0
    %925 = vmatpush2.xpose.msra.mxu0 0.0
    %926 = vmatprep.subr.mxu0 0.0
    %927 = vmatpush2.xpose.msra.mxu0 0.0
    %928 = vmatprep.subr.mxu0 0.0
    %929 = vmatpush2.xpose.msra.mxu0 0.0
    %930 = vmatprep.subr.mxu0 0.0
    %931 = vmatpush2.xpose.msra.mxu0 0.0
    %932 = vmatprep.subr.mxu0 0.0
    %933 = vmatpush2.xpose.msra.mxu0 0.0
    %934 = vmatprep.subr.mxu0 0.0
    %935 = vmatpush2.xpose.msra.mxu0 0.0
    %936 = vmatprep.subr.mxu0 0.0
    %937 = vmatpush2.xpose.msra.mxu0 0.0
    %938 = vmatprep.subr.mxu0 0.0
    %939 = vmatpush2.xpose.msra.mxu0 0.0
    %940 = vmatprep.subr.mxu0 0.0
    %941 = vmatpush2.xpose.msra.mxu0 0.0
    %942 = vmatprep.subr.mxu0 0.0
    %943 = vmatpush2.xpose.msra.mxu0 0.0
    %944 = vmatprep.mubr.f32.mxu0 0.0
    %945 = vmatmul.mubr.f32.gmra.mxu0 %v874
    %v946 = vpop.f32.mrf.mxu0
    %v947 = vadd.f32 0.0, %v946
    %v948 = vpop.f32.mrf.mxu0
    %949 = vdwg.mxu0
    %v950 = vsel %vm433, %v947, -inf
    %951 = vmax.xlane.f32.xlu0 %v950
    %v952 = vpop.xlane.xlu0 %951
    %v953 = vsub.f32 %v947, %v952
    %v954 = vmul.f32 %v953, 1.442695
    %v955 = vpow.pop %v954
    %v956 = vsel %vm433, %v955, 0.0
    %957 = vadd.xlane.f32.xlu0 %v956
    %v958 = vpop.xlane.xlu0 %957
    %v959 = vrcp.pop %v958
    %v960 = vmul.f32 %v955, %v959
    %961 = vrot.lane.b32.xlu0 %v335, 72
    %v962 = vpop.permute.xlu0 %961
    %963 = vrot.lane.b32.xlu0 %v340, 72
    %v964 = vpop.permute.xlu0 %963
    %v968 = vsel %vm433, %v960, 0
    %970 = vmatprep.subr.mxu0 0.0
    %971 = vmatpush1.msra.mxu0 0.0
    %972 = vmatprep.subr.mxu0 0.0
    %973 = vmatpush1.msra.mxu0 0.0
    %974 = vmatprep.subr.mxu0 0.0
    %975 = vmatpush1.msra.mxu0 0.0
    %976 = vmatprep.subr.mxu0 0.0
    %977 = vmatpush1.msra.mxu0 0.0
    %978 = vmatprep.subr.mxu0 0.0
    %979 = vmatpush1.msra.mxu0 0.0
    %980 = vmatprep.subr.mxu0 0.0
    %981 = vmatpush1.msra.mxu0 0.0
    %982 = vmatprep.subr.mxu0 0.0
    %983 = vmatpush1.msra.mxu0 0.0
    %984 = vmatprep.subr.mxu0 0.0
    %985 = vmatpush1.msra.mxu0 0.0
    %986 = vmatprep.subr.mxu0 0.0
    %987 = vmatpush1.msra.mxu0 0.0
    %988 = vmatprep.subr.mxu0 0.0
    %989 = vmatpush1.msra.mxu0 0.0
    %990 = vmatprep.subr.mxu0 0.0
    %991 = vmatpush1.msra.mxu0 0.0
    %992 = vmatprep.subr.mxu0 0.0
    %993 = vmatpush1.msra.mxu0 0.0
    %994 = vmatprep.subr.mxu0 0.0
    %995 = vmatpush1.msra.mxu0 0.0
    %996 = vmatprep.subr.mxu0 0.0
    %997 = vmatpush1.msra.mxu0 0.0
    %998 = vmatprep.subr.mxu0 0.0
    %999 = vmatpush1.msra.mxu0 %v964
    %1000 = vmatprep.subr.mxu0 0.0
    %1001 = vmatpush1.msra.mxu0 %v962
    %1002 = vmatprep.subr.mxu0 0.0
    %1003 = vmatpush2.msra.mxu0 0.0
    %1004 = vmatprep.subr.mxu0 0.0
    %1005 = vmatpush2.msra.mxu0 0.0
    %1006 = vmatprep.subr.mxu0 0.0
    %1007 = vmatpush2.msra.mxu0 0.0
    %1008 = vmatprep.subr.mxu0 0.0
    %1009 = vmatpush2.msra.mxu0 0.0
    %1010 = vmatprep.subr.mxu0 0.0
    %1011 = vmatpush2.msra.mxu0 0.0
    %1012 = vmatprep.subr.mxu0 0.0
    %1013 = vmatpush2.msra.mxu0 0.0
    %1014 = vmatprep.subr.mxu0 0.0
    %1015 = vmatpush2.msra.mxu0 0.0
    %1016 = vmatprep.subr.mxu0 0.0
    %1017 = vmatpush2.msra.mxu0 0.0
    %1018 = vmatprep.subr.mxu0 0.0
    %1019 = vmatpush2.msra.mxu0 0.0
    %1020 = vmatprep.subr.mxu0 0.0
    %1021 = vmatpush2.msra.mxu0 0.0
    %1022 = vmatprep.subr.mxu0 0.0
    %1023 = vmatpush2.msra.mxu0 0.0
    %1024 = vmatprep.subr.mxu0 0.0
    %1025 = vmatpush2.msra.mxu0 0.0
    %1026 = vmatprep.subr.mxu0 0.0
    %1027 = vmatpush2.msra.mxu0 0.0
    %1028 = vmatprep.subr.mxu0 0.0
    %1029 = vmatpush2.msra.mxu0 0.0
    %1030 = vmatprep.subr.mxu0 0.0
    %1031 = vmatpush2.msra.mxu0 0.0
    %1032 = vmatprep.subr.mxu0 0.0
    %1033 = vmatpush2.msra.mxu0 0.0
    %1034 = vmatprep.mubr.f32.mxu0 0.0
    %1035 = vmatmul.mubr.f32.gmra.mxu0 %v968
    %v1036 = vpop.f32.mrf.mxu0
    %v1037 = vadd.f32 0.0, %v1036
    %v1038 = vpop.f32.mrf.mxu0
    %1039 = vdwg.mxu0
    %1041 = vrot.lane.b32.xlu0 %v693, 8
    %v1042 = vpop.permute.xlu0 %1041
    %1045 = vrot.lane.b32.xlu0 %v865, 16
    %v1046 = vpop.permute.xlu0 %1045
    %1049 = vrot.lane.b32.xlu0 %v1037, 24
    %v1050 = vpop.permute.xlu0 %1049
    %v1052 = vsel %vm353, %v521, %v1042
    %v1053 = vsel %vm433, %v1052, %v1046
    %vm1054 = vcmask 195584
    %v1055 = vsel %vm1054, %v1053, %v1050
    %v1057 = vsel %vm353, %v345, 0
    %v1060 = vsel %vm353, %v350, 0
    %1062 = vmatprep.subr.mxu0 0.0
    %1063 = vmatpush1.xpose.msra.mxu0 0.0
    %1064 = vmatprep.subr.mxu0 0.0
    %1065 = vmatpush1.xpose.msra.mxu0 0.0
    %1066 = vmatprep.subr.mxu0 0.0
    %1067 = vmatpush1.xpose.msra.mxu0 0.0
    %1068 = vmatprep.subr.mxu0 0.0
    %1069 = vmatpush1.xpose.msra.mxu0 0.0
    %1070 = vmatprep.subr.mxu0 0.0
    %1071 = vmatpush1.xpose.msra.mxu0 0.0
    %1072 = vmatprep.subr.mxu0 0.0
    %1073 = vmatpush1.xpose.msra.mxu0 0.0
    %1074 = vmatprep.subr.mxu0 0.0
    %1075 = vmatpush1.xpose.msra.mxu0 0.0
    %1076 = vmatprep.subr.mxu0 0.0
    %1077 = vmatpush1.xpose.msra.mxu0 0.0
    %1078 = vmatprep.subr.mxu0 0.0
    %1079 = vmatpush1.xpose.msra.mxu0 0.0
    %1080 = vmatprep.subr.mxu0 0.0
    %1081 = vmatpush1.xpose.msra.mxu0 0.0
    %1082 = vmatprep.subr.mxu0 0.0
    %1083 = vmatpush1.xpose.msra.mxu0 0.0
    %1084 = vmatprep.subr.mxu0 0.0
    %1085 = vmatpush1.xpose.msra.mxu0 0.0
    %1086 = vmatprep.subr.mxu0 0.0
    %1087 = vmatpush1.xpose.msra.mxu0 0.0
    %1088 = vmatprep.subr.mxu0 0.0
    %1089 = vmatpush1.xpose.msra.mxu0 0.0
    %1090 = vmatprep.subr.mxu0 0.0
    %1091 = vmatpush1.xpose.msra.mxu0 %v1060
    %1092 = vmatprep.subr.mxu0 0.0
    %1093 = vmatpush1.xpose.msra.mxu0 %v1057
    %1094 = vmatprep.subr.mxu0 0.0
    %1095 = vmatpush2.xpose.msra.mxu0 0.0
    %1096 = vmatprep.subr.mxu0 0.0
    %1097 = vmatpush2.xpose.msra.mxu0 0.0
    %1098 = vmatprep.subr.mxu0 0.0
    %1099 = vmatpush2.xpose.msra.mxu0 0.0
    %1100 = vmatprep.subr.mxu0 0.0
    %1101 = vmatpush2.xpose.msra.mxu0 0.0
    %1102 = vmatprep.subr.mxu0 0.0
    %1103 = vmatpush2.xpose.msra.mxu0 0.0
    %1104 = vmatprep.subr.mxu0 0.0
    %1105 = vmatpush2.xpose.msra.mxu0 0.0
    %1106 = vmatprep.subr.mxu0 0.0
    %1107 = vmatpush2.xpose.msra.mxu0 0.0
    %1108 = vmatprep.subr.mxu0 0.0
    %1109 = vmatpush2.xpose.msra.mxu0 0.0
    %1110 = vmatprep.subr.mxu0 0.0
    %1111 = vmatpush2.xpose.msra.mxu0 0.0
    %1112 = vmatprep.subr.mxu0 0.0
    %1113 = vmatpush2.xpose.msra.mxu0 0.0
    %1114 = vmatprep.subr.mxu0 0.0
    %1115 = vmatpush2.xpose.msra.mxu0 0.0
    %1116 = vmatprep.subr.mxu0 0.0
    %1117 = vmatpush2.xpose.msra.mxu0 0.0
    %1118 = vmatprep.subr.mxu0 0.0
    %1119 = vmatpush2.xpose.msra.mxu0 0.0
    %1120 = vmatprep.subr.mxu0 0.0
    %1121 = vmatpush2.xpose.msra.mxu0 0.0
    %1122 = vmatprep.subr.mxu0 0.0
    %1123 = vmatpush2.xpose.msra.mxu0 0.0
    %1124 = vmatprep.subr.mxu0 0.0
    %1125 = vmatpush2.xpose.msra.mxu0 0.0
    %1126 = vmatprep.mubr.f32.mxu0 0.0
    %1127 = vmatmul.mubr.f32.gmra.mxu0 %v355
    %v1128 = vpop.f32.mrf.mxu0
    %v1129 = vadd.f32 0.0, %v1128
    %v1130 = vpop.f32.mrf.mxu0
    %1131 = vdwg.mxu0
    %v1132 = vsel %vm433, %v1129, -inf
    %1133 = vmax.xlane.f32.xlu0 %v1132
    %v1134 = vpop.xlane.xlu0 %1133
    %v1135 = vsub.f32 %v1129, %v1134
    %v1136 = vmul.f32 %v1135, 1.442695
    %v1137 = vpow.pop %v1136
    %v1138 = vsel %vm433, %v1137, 0.0
    %1139 = vadd.xlane.f32.xlu0 %v1138
    %v1140 = vpop.xlane.xlu0 %1139
    %v1141 = vrcp.pop %v1140
    %v1142 = vmul.f32 %v1137, %v1141
    %1143 = vrot.lane.b32.xlu0 %v345, 96
    %v1144 = vpop.permute.xlu0 %1143
    %1145 = vrot.lane.b32.xlu0 %v350, 96
    %v1146 = vpop.permute.xlu0 %1145
    %v1150 = vsel %vm433, %v1142, 0
    %1152 = vmatprep.subr.mxu0 0.0
    %1153 = vmatpush1.msra.mxu0 0.0
    %1154 = vmatprep.subr.mxu0 0.0
    %1155 = vmatpush1.msra.mxu0 0.0
    %1156 = vmatprep.subr.mxu0 0.0
    %1157 = vmatpush1.msra.mxu0 0.0
    %1158 = vmatprep.subr.mxu0 0.0
    %1159 = vmatpush1.msra.mxu0 0.0
    %1160 = vmatprep.subr.mxu0 0.0
    %1161 = vmatpush1.msra.mxu0 0.0
    %1162 = vmatprep.subr.mxu0 0.0
    %1163 = vmatpush1.msra.mxu0 0.0
    %1164 = vmatprep.subr.mxu0 0.0
    %1165 = vmatpush1.msra.mxu0 0.0
    %1166 = vmatprep.subr.mxu0 0.0
    %1167 = vmatpush1.msra.mxu0 0.0
    %1168 = vmatprep.subr.mxu0 0.0
    %1169 = vmatpush1.msra.mxu0 0.0
    %1170 = vmatprep.subr.mxu0 0.0
    %1171 = vmatpush1.msra.mxu0 0.0
    %1172 = vmatprep.subr.mxu0 0.0
    %1173 = vmatpush1.msra.mxu0 0.0
    %1174 = vmatprep.subr.mxu0 0.0
    %1175 = vmatpush1.msra.mxu0 0.0
    %1176 = vmatprep.subr.mxu0 0.0
    %1177 = vmatpush1.msra.mxu0 0.0
    %1178 = vmatprep.subr.mxu0 0.0
    %1179 = vmatpush1.msra.mxu0 0.0
    %1180 = vmatprep.subr.mxu0 0.0
    %1181 = vmatpush1.msra.mxu0 %v1146
    %1182 = vmatprep.subr.mxu0 0.0
    %1183 = vmatpush1.msra.mxu0 %v1144
    %1184 = vmatprep.subr.mxu0 0.0
    %1185 = vmatpush2.msra.mxu0 0.0
    %1186 = vmatprep.subr.mxu0 0.0
    %1187 = vmatpush2.msra.mxu0 0.0
    %1188 = vmatprep.subr.mxu0 0.0
    %1189 = vmatpush2.msra.mxu0 0.0
    %1190 = vmatprep.subr.mxu0 0.0
    %1191 = vmatpush2.msra.mxu0 0.0
    %1192 = vmatprep.subr.mxu0 0.0
    %1193 = vmatpush2.msra.mxu0 0.0
    %1194 = vmatprep.subr.mxu0 0.0
    %1195 = vmatpush2.msra.mxu0 0.0
    %1196 = vmatprep.subr.mxu0 0.0
    %1197 = vmatpush2.msra.mxu0 0.0
    %1198 = vmatprep.subr.mxu0 0.0
    %1199 = vmatpush2.msra.mxu0 0.0
    %1200 = vmatprep.subr.mxu0 0.0
    %1201 = vmatpush2.msra.mxu0 0.0
    %1202 = vmatprep.subr.mxu0 0.0
    %1203 = vmatpush2.msra.mxu0 0.0
    %1204 = vmatprep.subr.mxu0 0.0
    %1205 = vmatpush2.msra.mxu0 0.0
    %1206 = vmatprep.subr.mxu0 0.0
    %1207 = vmatpush2.msra.mxu0 0.0
    %1208 = vmatprep.subr.mxu0 0.0
    %1209 = vmatpush2.msra.mxu0 0.0
    %1210 = vmatprep.subr.mxu0 0.0
    %1211 = vmatpush2.msra.mxu0 0.0
    %1212 = vmatprep.subr.mxu0 0.0
    %1213 = vmatpush2.msra.mxu0 0.0
    %1214 = vmatprep.subr.mxu0 0.0
    %1215 = vmatpush2.msra.mxu0 0.0
    %1216 = vmatprep.mubr.f32.mxu0 0.0
    %1217 = vmatmul.mubr.f32.gmra.mxu0 %v1150
    %v1218 = vpop.f32.mrf.mxu0
    %v1219 = vadd.f32 0.0, %v1218
    %v1220 = vpop.f32.mrf.mxu0
    %1221 = vdwg.mxu0
    %1222 = vrot.lane.b32.xlu0 %v345, 120
    %v1223 = vpop.permute.xlu0 %1222
    %1224 = vrot.lane.b32.xlu0 %v350, 120
    %v1225 = vpop.permute.xlu0 %1224
    %v1226 = vsel %vm353, %v1223, 0
    %v1228 = vsel %vm353, %v1225, 0
    %1230 = vmatprep.subr.mxu0 0.0
    %1231 = vmatpush1.xpose.msra.mxu0 0.0
    %1232 = vmatprep.subr.mxu0 0.0
    %1233 = vmatpush1.xpose.msra.mxu0 0.0
    %1234 = vmatprep.subr.mxu0 0.0
    %1235 = vmatpush1.xpose.msra.mxu0 0.0
    %1236 = vmatprep.subr.mxu0 0.0
    %1237 = vmatpush1.xpose.msra.mxu0 0.0
    %1238 = vmatprep.subr.mxu0 0.0
    %1239 = vmatpush1.xpose.msra.mxu0 0.0
    %1240 = vmatprep.subr.mxu0 0.0
    %1241 = vmatpush1.xpose.msra.mxu0 0.0
    %1242 = vmatprep.subr.mxu0 0.0
    %1243 = vmatpush1.xpose.msra.mxu0 0.0
    %1244 = vmatprep.subr.mxu0 0.0
    %1245 = vmatpush1.xpose.msra.mxu0 0.0
    %1246 = vmatprep.subr.mxu0 0.0
    %1247 = vmatpush1.xpose.msra.mxu0 0.0
    %1248 = vmatprep.subr.mxu0 0.0
    %1249 = vmatpush1.xpose.msra.mxu0 0.0
    %1250 = vmatprep.subr.mxu0 0.0
    %1251 = vmatpush1.xpose.msra.mxu0 0.0
    %1252 = vmatprep.subr.mxu0 0.0
    %1253 = vmatpush1.xpose.msra.mxu0 0.0
    %1254 = vmatprep.subr.mxu0 0.0
    %1255 = vmatpush1.xpose.msra.mxu0 0.0
    %1256 = vmatprep.subr.mxu0 0.0
    %1257 = vmatpush1.xpose.msra.mxu0 0.0
    %1258 = vmatprep.subr.mxu0 0.0
    %1259 = vmatpush1.xpose.msra.mxu0 %v1228
    %1260 = vmatprep.subr.mxu0 0.0
    %1261 = vmatpush1.xpose.msra.mxu0 %v1226
    %1262 = vmatprep.subr.mxu0 0.0
    %1263 = vmatpush2.xpose.msra.mxu0 0.0
    %1264 = vmatprep.subr.mxu0 0.0
    %1265 = vmatpush2.xpose.msra.mxu0 0.0
    %1266 = vmatprep.subr.mxu0 0.0
    %1267 = vmatpush2.xpose.msra.mxu0 0.0
    %1268 = vmatprep.subr.mxu0 0.0
    %1269 = vmatpush2.xpose.msra.mxu0 0.0
    %1270 = vmatprep.subr.mxu0 0.0
    %1271 = vmatpush2.xpose.msra.mxu0 0.0
    %1272 = vmatprep.subr.mxu0 0.0
    %1273 = vmatpush2.xpose.msra.mxu0 0.0
    %1274 = vmatprep.subr.mxu0 0.0
    %1275 = vmatpush2.xpose.msra.mxu0 0.0
    %1276 = vmatprep.subr.mxu0 0.0
    %1277 = vmatpush2.xpose.msra.mxu0 0.0
    %1278 = vmatprep.subr.mxu0 0.0
    %1279 = vmatpush2.xpose.msra.mxu0 0.0
    %1280 = vmatprep.subr.mxu0 0.0
    %1281 = vmatpush2.xpose.msra.mxu0 0.0
    %1282 = vmatprep.subr.mxu0 0.0
    %1283 = vmatpush2.xpose.msra.mxu0 0.0
    %1284 = vmatprep.subr.mxu0 0.0
    %1285 = vmatpush2.xpose.msra.mxu0 0.0
    %1286 = vmatprep.subr.mxu0 0.0
    %1287 = vmatpush2.xpose.msra.mxu0 0.0
    %1288 = vmatprep.subr.mxu0 0.0
    %1289 = vmatpush2.xpose.msra.mxu0 0.0
    %1290 = vmatprep.subr.mxu0 0.0
    %1291 = vmatpush2.xpose.msra.mxu0 0.0
    %1292 = vmatprep.subr.mxu0 0.0
    %1293 = vmatpush2.xpose.msra.mxu0 0.0
    %1294 = vmatprep.mubr.f32.mxu0 0.0
    %1295 = vmatmul.mubr.f32.gmra.mxu0 %v530
    %v1296 = vpop.f32.mrf.mxu0
    %v1297 = vadd.f32 0.0, %v1296
    %v1298 = vpop.f32.mrf.mxu0
    %1299 = vdwg.mxu0
    %v1300 = vsel %vm433, %v1297, -inf
    %1301 = vmax.xlane.f32.xlu0 %v1300
    %v1302 = vpop.xlane.xlu0 %1301
    %v1303 = vsub.f32 %v1297, %v1302
    %v1304 = vmul.f32 %v1303, 1.442695
    %v1305 = vpow.pop %v1304
    %v1306 = vsel %vm433, %v1305, 0.0
    %1307 = vadd.xlane.f32.xlu0 %v1306
    %v1308 = vpop.xlane.xlu0 %1307
    %v1309 = vrcp.pop %v1308
    %v1310 = vmul.f32 %v1305, %v1309
    %1311 = vrot.lane.b32.xlu0 %v345, 88
    %v1312 = vpop.permute.xlu0 %1311
    %1313 = vrot.lane.b32.xlu0 %v350, 88
    %v1314 = vpop.permute.xlu0 %1313
    %v1318 = vsel %vm433, %v1310, 0
    %1320 = vmatprep.subr.mxu0 0.0
    %1321 = vmatpush1.msra.mxu0 0.0
    %1322 = vmatprep.subr.mxu0 0.0
    %1323 = vmatpush1.msra.mxu0 0.0
    %1324 = vmatprep.subr.mxu0 0.0
    %1325 = vmatpush1.msra.mxu0 0.0
    %1326 = vmatprep.subr.mxu0 0.0
    %1327 = vmatpush1.msra.mxu0 0.0
    %1328 = vmatprep.subr.mxu0 0.0
    %1329 = vmatpush1.msra.mxu0 0.0
    %1330 = vmatprep.subr.mxu0 0.0
    %1331 = vmatpush1.msra.mxu0 0.0
    %1332 = vmatprep.subr.mxu0 0.0
    %1333 = vmatpush1.msra.mxu0 0.0
    %1334 = vmatprep.subr.mxu0 0.0
    %1335 = vmatpush1.msra.mxu0 0.0
    %1336 = vmatprep.subr.mxu0 0.0
    %1337 = vmatpush1.msra.mxu0 0.0
    %1338 = vmatprep.subr.mxu0 0.0
    %1339 = vmatpush1.msra.mxu0 0.0
    %1340 = vmatprep.subr.mxu0 0.0
    %1341 = vmatpush1.msra.mxu0 0.0
    %1342 = vmatprep.subr.mxu0 0.0
    %1343 = vmatpush1.msra.mxu0 0.0
    %1344 = vmatprep.subr.mxu0 0.0
    %1345 = vmatpush1.msra.mxu0 0.0
    %1346 = vmatprep.subr.mxu0 0.0
    %1347 = vmatpush1.msra.mxu0 0.0
    %1348 = vmatprep.subr.mxu0 0.0
    %1349 = vmatpush1.msra.mxu0 %v1314
    %1350 = vmatprep.subr.mxu0 0.0
    %1351 = vmatpush1.msra.mxu0 %v1312
    %1352 = vmatprep.subr.mxu0 0.0
    %1353 = vmatpush2.msra.mxu0 0.0
    %1354 = vmatprep.subr.mxu0 0.0
    %1355 = vmatpush2.msra.mxu0 0.0
    %1356 = vmatprep.subr.mxu0 0.0
    %1357 = vmatpush2.msra.mxu0 0.0
    %1358 = vmatprep.subr.mxu0 0.0
    %1359 = vmatpush2.msra.mxu0 0.0
    %1360 = vmatprep.subr.mxu0 0.0
    %1361 = vmatpush2.msra.mxu0 0.0
    %1362 = vmatprep.subr.mxu0 0.0
    %1363 = vmatpush2.msra.mxu0 0.0
    %1364 = vmatprep.subr.mxu0 0.0
    %1365 = vmatpush2.msra.mxu0 0.0
    %1366 = vmatprep.subr.mxu0 0.0
    %1367 = vmatpush2.msra.mxu0 0.0
    %1368 = vmatprep.subr.mxu0 0.0
    %1369 = vmatpush2.msra.mxu0 0.0
    %1370 = vmatprep.subr.mxu0 0.0
    %1371 = vmatpush2.msra.mxu0 0.0
    %1372 = vmatprep.subr.mxu0 0.0
    %1373 = vmatpush2.msra.mxu0 0.0
    %1374 = vmatprep.subr.mxu0 0.0
    %1375 = vmatpush2.msra.mxu0 0.0
    %1376 = vmatprep.subr.mxu0 0.0
    %1377 = vmatpush2.msra.mxu0 0.0
    %1378 = vmatprep.subr.mxu0 0.0
    %1379 = vmatpush2.msra.mxu0 0.0
    %1380 = vmatprep.subr.mxu0 0.0
    %1381 = vmatpush2.msra.mxu0 0.0
    %1382 = vmatprep.subr.mxu0 0.0
    %1383 = vmatpush2.msra.mxu0 0.0
    %1384 = vmatprep.mubr.f32.mxu0 0.0
    %1385 = vmatmul.mubr.f32.gmra.mxu0 %v1318
    %v1386 = vpop.f32.mrf.mxu0
    %v1387 = vadd.f32 0.0, %v1386
    %v1388 = vpop.f32.mrf.mxu0
    %1389 = vdwg.mxu0
    %1390 = vrot.lane.b32.xlu0 %v345, 112
    %v1391 = vpop.permute.xlu0 %1390
    %1392 = vrot.lane.b32.xlu0 %v350, 112
    %v1393 = vpop.permute.xlu0 %1392
    %v1394 = vsel %vm353, %v1391, 0
    %v1396 = vsel %vm353, %v1393, 0
    %1398 = vmatprep.subr.mxu0 0.0
    %1399 = vmatpush1.xpose.msra.mxu0 0.0
    %1400 = vmatprep.subr.mxu0 0.0
    %1401 = vmatpush1.xpose.msra.mxu0 0.0
    %1402 = vmatprep.subr.mxu0 0.0
    %1403 = vmatpush1.xpose.msra.mxu0 0.0
    %1404 = vmatprep.subr.mxu0 0.0
    %1405 = vmatpush1.xpose.msra.mxu0 0.0
    %1406 = vmatprep.subr.mxu0 0.0
    %1407 = vmatpush1.xpose.msra.mxu0 0.0
    %1408 = vmatprep.subr.mxu0 0.0
    %1409 = vmatpush1.xpose.msra.mxu0 0.0
    %1410 = vmatprep.subr.mxu0 0.0
    %1411 = vmatpush1.xpose.msra.mxu0 0.0
    %1412 = vmatprep.subr.mxu0 0.0
    %1413 = vmatpush1.xpose.msra.mxu0 0.0
    %1414 = vmatprep.subr.mxu0 0.0
    %1415 = vmatpush1.xpose.msra.mxu0 0.0
    %1416 = vmatprep.subr.mxu0 0.0
    %1417 = vmatpush1.xpose.msra.mxu0 0.0
    %1418 = vmatprep.subr.mxu0 0.0
    %1419 = vmatpush1.xpose.msra.mxu0 0.0
    %1420 = vmatprep.subr.mxu0 0.0
    %1421 = vmatpush1.xpose.msra.mxu0 0.0
    %1422 = vmatprep.subr.mxu0 0.0
    %1423 = vmatpush1.xpose.msra.mxu0 0.0
    %1424 = vmatprep.subr.mxu0 0.0
    %1425 = vmatpush1.xpose.msra.mxu0 0.0
    %1426 = vmatprep.subr.mxu0 0.0
    %1427 = vmatpush1.xpose.msra.mxu0 %v1396
    %1428 = vmatprep.subr.mxu0 0.0
    %1429 = vmatpush1.xpose.msra.mxu0 %v1394
    %1430 = vmatprep.subr.mxu0 0.0
    %1431 = vmatpush2.xpose.msra.mxu0 0.0
    %1432 = vmatprep.subr.mxu0 0.0
    %1433 = vmatpush2.xpose.msra.mxu0 0.0
    %1434 = vmatprep.subr.mxu0 0.0
    %1435 = vmatpush2.xpose.msra.mxu0 0.0
    %1436 = vmatprep.subr.mxu0 0.0
    %1437 = vmatpush2.xpose.msra.mxu0 0.0
    %1438 = vmatprep.subr.mxu0 0.0
    %1439 = vmatpush2.xpose.msra.mxu0 0.0
    %1440 = vmatprep.subr.mxu0 0.0
    %1441 = vmatpush2.xpose.msra.mxu0 0.0
    %1442 = vmatprep.subr.mxu0 0.0
    %1443 = vmatpush2.xpose.msra.mxu0 0.0
    %1444 = vmatprep.subr.mxu0 0.0
    %1445 = vmatpush2.xpose.msra.mxu0 0.0
    %1446 = vmatprep.subr.mxu0 0.0
    %1447 = vmatpush2.xpose.msra.mxu0 0.0
    %1448 = vmatprep.subr.mxu0 0.0
    %1449 = vmatpush2.xpose.msra.mxu0 0.0
    %1450 = vmatprep.subr.mxu0 0.0
    %1451 = vmatpush2.xpose.msra.mxu0 0.0
    %1452 = vmatprep.subr.mxu0 0.0
    %1453 = vmatpush2.xpose.msra.mxu0 0.0
    %1454 = vmatprep.subr.mxu0 0.0
    %1455 = vmatpush2.xpose.msra.mxu0 0.0
    %1456 = vmatprep.subr.mxu0 0.0
    %1457 = vmatpush2.xpose.msra.mxu0 0.0
    %1458 = vmatprep.subr.mxu0 0.0
    %1459 = vmatpush2.xpose.msra.mxu0 0.0
    %1460 = vmatprep.subr.mxu0 0.0
    %1461 = vmatpush2.xpose.msra.mxu0 0.0
    %1462 = vmatprep.mubr.f32.mxu0 0.0
    %1463 = vmatmul.mubr.f32.gmra.mxu0 %v702
    %v1464 = vpop.f32.mrf.mxu0
    %v1465 = vadd.f32 0.0, %v1464
    %v1466 = vpop.f32.mrf.mxu0
    %1467 = vdwg.mxu0
    %v1468 = vsel %vm433, %v1465, -inf
    %1469 = vmax.xlane.f32.xlu0 %v1468
    %v1470 = vpop.xlane.xlu0 %1469
    %v1471 = vsub.f32 %v1465, %v1470
    %v1472 = vmul.f32 %v1471, 1.442695
    %v1473 = vpow.pop %v1472
    %v1474 = vsel %vm433, %v1473, 0.0
    %1475 = vadd.xlane.f32.xlu0 %v1474
    %v1476 = vpop.xlane.xlu0 %1475
    %v1477 = vrcp.pop %v1476
    %v1478 = vmul.f32 %v1473, %v1477
    %1479 = vrot.lane.b32.xlu0 %v345, 80
    %v1480 = vpop.permute.xlu0 %1479
    %1481 = vrot.lane.b32.xlu0 %v350, 80
    %v1482 = vpop.permute.xlu0 %1481
    %v1486 = vsel %vm433, %v1478, 0
    %1488 = vmatprep.subr.mxu0 0.0
    %1489 = vmatpush1.msra.mxu0 0.0
    %1490 = vmatprep.subr.mxu0 0.0
    %1491 = vmatpush1.msra.mxu0 0.0
    %1492 = vmatprep.subr.mxu0 0.0
    %1493 = vmatpush1.msra.mxu0 0.0
    %1494 = vmatprep.subr.mxu0 0.0
    %1495 = vmatpush1.msra.mxu0 0.0
    %1496 = vmatprep.subr.mxu0 0.0
    %1497 = vmatpush1.msra.mxu0 0.0
    %1498 = vmatprep.subr.mxu0 0.0
    %1499 = vmatpush1.msra.mxu0 0.0
    %1500 = vmatprep.subr.mxu0 0.0
    %1501 = vmatpush1.msra.mxu0 0.0
    %1502 = vmatprep.subr.mxu0 0.0
    %1503 = vmatpush1.msra.mxu0 0.0
    %1504 = vmatprep.subr.mxu0 0.0
    %1505 = vmatpush1.msra.mxu0 0.0
    %1506 = vmatprep.subr.mxu0 0.0
    %1507 = vmatpush1.msra.mxu0 0.0
    %1508 = vmatprep.subr.mxu0 0.0
    %1509 = vmatpush1.msra.mxu0 0.0
    %1510 = vmatprep.subr.mxu0 0.0
    %1511 = vmatpush1.msra.mxu0 0.0
    %1512 = vmatprep.subr.mxu0 0.0
    %1513 = vmatpush1.msra.mxu0 0.0
    %1514 = vmatprep.subr.mxu0 0.0
    %1515 = vmatpush1.msra.mxu0 0.0
    %1516 = vmatprep.subr.mxu0 0.0
    %1517 = vmatpush1.msra.mxu0 %v1482
    %1518 = vmatprep.subr.mxu0 0.0
    %1519 = vmatpush1.msra.mxu0 %v1480
    %1520 = vmatprep.subr.mxu0 0.0
    %1521 = vmatpush2.msra.mxu0 0.0
    %1522 = vmatprep.subr.mxu0 0.0
    %1523 = vmatpush2.msra.mxu0 0.0
    %1524 = vmatprep.subr.mxu0 0.0
    %1525 = vmatpush2.msra.mxu0 0.0
    %1526 = vmatprep.subr.mxu0 0.0
    %1527 = vmatpush2.msra.mxu0 0.0
    %1528 = vmatprep.subr.mxu0 0.0
    %1529 = vmatpush2.msra.mxu0 0.0
    %1530 = vmatprep.subr.mxu0 0.0
    %1531 = vmatpush2.msra.mxu0 0.0
    %1532 = vmatprep.subr.mxu0 0.0
    %1533 = vmatpush2.msra.mxu0 0.0
    %1534 = vmatprep.subr.mxu0 0.0
    %1535 = vmatpush2.msra.mxu0 0.0
    %1536 = vmatprep.subr.mxu0 0.0
    %1537 = vmatpush2.msra.mxu0 0.0
    %1538 = vmatprep.subr.mxu0 0.0
    %1539 = vmatpush2.msra.mxu0 0.0
    %1540 = vmatprep.subr.mxu0 0.0
    %1541 = vmatpush2.msra.mxu0 0.0
    %1542 = vmatprep.subr.mxu0 0.0
    %1543 = vmatpush2.msra.mxu0 0.0
    %1544 = vmatprep.subr.mxu0 0.0
    %1545 = vmatpush2.msra.mxu0 0.0
    %1546 = vmatprep.subr.mxu0 0.0
    %1547 = vmatpush2.msra.mxu0 0.0
    %1548 = vmatprep.subr.mxu0 0.0
    %1549 = vmatpush2.msra.mxu0 0.0
    %1550 = vmatprep.subr.mxu0 0.0
    %1551 = vmatpush2.msra.mxu0 0.0
    %1552 = vmatprep.mubr.f32.mxu0 0.0
    %1553 = vmatmul.mubr.f32.gmra.mxu0 %v1486
    %v1554 = vpop.f32.mrf.mxu0
    %v1555 = vadd.f32 0.0, %v1554
    %v1556 = vpop.f32.mrf.mxu0
    %1557 = vdwg.mxu0
    %1558 = vrot.lane.b32.xlu0 %v345, 104
    %v1559 = vpop.permute.xlu0 %1558
    %1560 = vrot.lane.b32.xlu0 %v350, 104
    %v1561 = vpop.permute.xlu0 %1560
    %v1562 = vsel %vm353, %v1559, 0
    %v1564 = vsel %vm353, %v1561, 0
    %1566 = vmatprep.subr.mxu0 0.0
    %1567 = vmatpush1.xpose.msra.mxu0 0.0
    %1568 = vmatprep.subr.mxu0 0.0
    %1569 = vmatpush1.xpose.msra.mxu0 0.0
    %1570 = vmatprep.subr.mxu0 0.0
    %1571 = vmatpush1.xpose.msra.mxu0 0.0
    %1572 = vmatprep.subr.mxu0 0.0
    %1573 = vmatpush1.xpose.msra.mxu0 0.0
    %1574 = vmatprep.subr.mxu0 0.0
    %1575 = vmatpush1.xpose.msra.mxu0 0.0
    %1576 = vmatprep.subr.mxu0 0.0
    %1577 = vmatpush1.xpose.msra.mxu0 0.0
    %1578 = vmatprep.subr.mxu0 0.0
    %1579 = vmatpush1.xpose.msra.mxu0 0.0
    %1580 = vmatprep.subr.mxu0 0.0
    %1581 = vmatpush1.xpose.msra.mxu0 0.0
    %1582 = vmatprep.subr.mxu0 0.0
    %1583 = vmatpush1.xpose.msra.mxu0 0.0
    %1584 = vmatprep.subr.mxu0 0.0
    %1585 = vmatpush1.xpose.msra.mxu0 0.0
    %1586 = vmatprep.subr.mxu0 0.0
    %1587 = vmatpush1.xpose.msra.mxu0 0.0
    %1588 = vmatprep.subr.mxu0 0.0
    %1589 = vmatpush1.xpose.msra.mxu0 0.0
    %1590 = vmatprep.subr.mxu0 0.0
    %1591 = vmatpush1.xpose.msra.mxu0 0.0
    %1592 = vmatprep.subr.mxu0 0.0
    %1593 = vmatpush1.xpose.msra.mxu0 0.0
    %1594 = vmatprep.subr.mxu0 0.0
    %1595 = vmatpush1.xpose.msra.mxu0 %v1564
    %1596 = vmatprep.subr.mxu0 0.0
    %1597 = vmatpush1.xpose.msra.mxu0 %v1562
    %1598 = vmatprep.subr.mxu0 0.0
    %1599 = vmatpush2.xpose.msra.mxu0 0.0
    %1600 = vmatprep.subr.mxu0 0.0
    %1601 = vmatpush2.xpose.msra.mxu0 0.0
    %1602 = vmatprep.subr.mxu0 0.0
    %1603 = vmatpush2.xpose.msra.mxu0 0.0
    %1604 = vmatprep.subr.mxu0 0.0
    %1605 = vmatpush2.xpose.msra.mxu0 0.0
    %1606 = vmatprep.subr.mxu0 0.0
    %1607 = vmatpush2.xpose.msra.mxu0 0.0
    %1608 = vmatprep.subr.mxu0 0.0
    %1609 = vmatpush2.xpose.msra.mxu0 0.0
    %1610 = vmatprep.subr.mxu0 0.0
    %1611 = vmatpush2.xpose.msra.mxu0 0.0
    %1612 = vmatprep.subr.mxu0 0.0
    %1613 = vmatpush2.xpose.msra.mxu0 0.0
    %1614 = vmatprep.subr.mxu0 0.0
    %1615 = vmatpush2.xpose.msra.mxu0 0.0
    %1616 = vmatprep.subr.mxu0 0.0
    %1617 = vmatpush2.xpose.msra.mxu0 0.0
    %1618 = vmatprep.subr.mxu0 0.0
    %1619 = vmatpush2.xpose.msra.mxu0 0.0
    %1620 = vmatprep.subr.mxu0 0.0
    %1621 = vmatpush2.xpose.msra.mxu0 0.0
    %1622 = vmatprep.subr.mxu0 0.0
    %1623 = vmatpush2.xpose.msra.mxu0 0.0
    %1624 = vmatprep.subr.mxu0 0.0
    %1625 = vmatpush2.xpose.msra.mxu0 0.0
    %1626 = vmatprep.subr.mxu0 0.0
    %1627 = vmatpush2.xpose.msra.mxu0 0.0
    %1628 = vmatprep.subr.mxu0 0.0
    %1629 = vmatpush2.xpose.msra.mxu0 0.0
    %1630 = vmatprep.mubr.f32.mxu0 0.0
    %1631 = vmatmul.mubr.f32.gmra.mxu0 %v874
    %v1632 = vpop.f32.mrf.mxu0
    %v1633 = vadd.f32 0.0, %v1632
    %v1634 = vpop.f32.mrf.mxu0
    %1635 = vdwg.mxu0
    %v1636 = vsel %vm433, %v1633, -inf
    %1637 = vmax.xlane.f32.xlu0 %v1636
    %v1638 = vpop.xlane.xlu0 %1637
    %v1639 = vsub.f32 %v1633, %v1638
    %v1640 = vmul.f32 %v1639, 1.442695
    %v1641 = vpow.pop %v1640
    %v1642 = vsel %vm433, %v1641, 0.0
    %1643 = vadd.xlane.f32.xlu0 %v1642
    %v1644 = vpop.xlane.xlu0 %1643
    %v1645 = vrcp.pop %v1644
    %v1646 = vmul.f32 %v1641, %v1645
    %1647 = vrot.lane.b32.xlu0 %v345, 72
    %v1648 = vpop.permute.xlu0 %1647
    %1649 = vrot.lane.b32.xlu0 %v350, 72
    %v1650 = vpop.permute.xlu0 %1649
    %v1654 = vsel %vm433, %v1646, 0
    %1656 = vmatprep.subr.mxu0 0.0
    %1657 = vmatpush1.msra.mxu0 0.0
    %1658 = vmatprep.subr.mxu0 0.0
    %1659 = vmatpush1.msra.mxu0 0.0
    %1660 = vmatprep.subr.mxu0 0.0
    %1661 = vmatpush1.msra.mxu0 0.0
    %1662 = vmatprep.subr.mxu0 0.0
    %1663 = vmatpush1.msra.mxu0 0.0
    %1664 = vmatprep.subr.mxu0 0.0
    %1665 = vmatpush1.msra.mxu0 0.0
    %1666 = vmatprep.subr.mxu0 0.0
    %1667 = vmatpush1.msra.mxu0 0.0
    %1668 = vmatprep.subr.mxu0 0.0
    %1669 = vmatpush1.msra.mxu0 0.0
    %1670 = vmatprep.subr.mxu0 0.0
    %1671 = vmatpush1.msra.mxu0 0.0
    %1672 = vmatprep.subr.mxu0 0.0
    %1673 = vmatpush1.msra.mxu0 0.0
    %1674 = vmatprep.subr.mxu0 0.0
    %1675 = vmatpush1.msra.mxu0 0.0
    %1676 = vmatprep.subr.mxu0 0.0
    %1677 = vmatpush1.msra.mxu0 0.0
    %1678 = vmatprep.subr.mxu0 0.0
    %1679 = vmatpush1.msra.mxu0 0.0
    %1680 = vmatprep.subr.mxu0 0.0
    %1681 = vmatpush1.msra.mxu0 0.0
    %1682 = vmatprep.subr.mxu0 0.0
    %1683 = vmatpush1.msra.mxu0 0.0
    %1684 = vmatprep.subr.mxu0 0.0
    %1685 = vmatpush1.msra.mxu0 %v1650
    %1686 = vmatprep.subr.mxu0 0.0
    %1687 = vmatpush1.msra.mxu0 %v1648
    %1688 = vmatprep.subr.mxu0 0.0
    %1689 = vmatpush2.msra.mxu0 0.0
    %1690 = vmatprep.subr.mxu0 0.0
    %1691 = vmatpush2.msra.mxu0 0.0
    %1692 = vmatprep.subr.mxu0 0.0
    %1693 = vmatpush2.msra.mxu0 0.0
    %1694 = vmatprep.subr.mxu0 0.0
    %1695 = vmatpush2.msra.mxu0 0.0
    %1696 = vmatprep.subr.mxu0 0.0
    %1697 = vmatpush2.msra.mxu0 0.0
    %1698 = vmatprep.subr.mxu0 0.0
    %1699 = vmatpush2.msra.mxu0 0.0
    %1700 = vmatprep.subr.mxu0 0.0
    %1701 = vmatpush2.msra.mxu0 0.0
    %1702 = vmatprep.subr.mxu0 0.0
    %1703 = vmatpush2.msra.mxu0 0.0
    %1704 = vmatprep.subr.mxu0 0.0
    %1705 = vmatpush2.msra.mxu0 0.0
    %1706 = vmatprep.subr.mxu0 0.0
    %1707 = vmatpush2.msra.mxu0 0.0
    %1708 = vmatprep.subr.mxu0 0.0
    %1709 = vmatpush2.msra.mxu0 0.0
    %1710 = vmatprep.subr.mxu0 0.0
    %1711 = vmatpush2.msra.mxu0 0.0
    %1712 = vmatprep.subr.mxu0 0.0
    %1713 = vmatpush2.msra.mxu0 0.0
    %1714 = vmatprep.subr.mxu0 0.0
    %1715 = vmatpush2.msra.mxu0 0.0
    %1716 = vmatprep.subr.mxu0 0.0
    %1717 = vmatpush2.msra.mxu0 0.0
    %1718 = vmatprep.subr.mxu0 0.0
    %1719 = vmatpush2.msra.mxu0 0.0
    %1720 = vmatprep.mubr.f32.mxu0 0.0
    %1721 = vmatmul.mubr.f32.gmra.mxu0 %v1654
    %v1722 = vpop.f32.mrf.mxu0
    %v1723 = vadd.f32 0.0, %v1722
    %v1724 = vpop.f32.mrf.mxu0
    %1725 = vdwg.mxu0
    %1727 = vrot.lane.b32.xlu0 %v1387, 8
    %v1728 = vpop.permute.xlu0 %1727
    %1731 = vrot.lane.b32.xlu0 %v1555, 16
    %v1732 = vpop.permute.xlu0 %1731
    %1735 = vrot.lane.b32.xlu0 %v1723, 24
    %v1736 = vpop.permute.xlu0 %1735
    %v1738 = vsel %vm353, %v1219, %v1728
    %v1739 = vsel %vm433, %v1738, %v1732
    %v1740 = vsel %vm1054, %v1739, %v1736
    %1741 = vrot.lane.b32.xlu0 %v56, 32
    %v1742 = vpop.permute.xlu0 %1741
    %1743 = vrot.lane.b32.xlu0 %v57, 32
    %v1744 = vpop.permute.xlu0 %1743
    %1745 = vrot.lane.b32.xlu0 %v58, 32
    %v1746 = vpop.permute.xlu0 %1745
    %1747 = vrot.lane.b32.xlu0 %v59, 32
    %v1748 = vpop.permute.xlu0 %1747
    %1753 = vrot.lane.b32.xlu0 %v161, 32
    %v1754 = vpop.permute.xlu0 %1753
    %v1757 = vsel %vm67, %v1055, 0
    %v1760 = vsel %vm67, %v1740, 0
    %1762 = vmatprep.subr.mxu0 0.0
    %1763 = vmatpush1.msra.mxu0 0.0
    %1764 = vmatprep.subr.mxu0 0.0
    %1765 = vmatpush1.msra.mxu0 0.0
    %1766 = vmatprep.subr.mxu0 0.0
    %1767 = vmatpush1.msra.mxu0 0.0
    %1768 = vmatprep.subr.mxu0 0.0
    %1769 = vmatpush1.msra.mxu0 0.0
    %1770 = vmatprep.subr.mxu0 0.0
    %1771 = vmatpush1.msra.mxu0 0.0
    %1772 = vmatprep.subr.mxu0 0.0
    %1773 = vmatpush1.msra.mxu0 0.0
    %1774 = vmatprep.subr.mxu0 0.0
    %1775 = vmatpush1.msra.mxu0 0.0
    %1776 = vmatprep.subr.mxu0 0.0
    %1777 = vmatpush1.msra.mxu0 0.0
    %1778 = vmatprep.subr.mxu0 0.0
    %1779 = vmatpush1.msra.mxu0 0.0
    %1780 = vmatprep.subr.mxu0 0.0
    %1781 = vmatpush1.msra.mxu0 0.0
    %1782 = vmatprep.subr.mxu0 0.0
    %1783 = vmatpush1.msra.mxu0 0.0
    %1784 = vmatprep.subr.mxu0 0.0
    %1785 = vmatpush1.msra.mxu0 0.0
    %1786 = vmatprep.subr.mxu0 0.0
    %1787 = vmatpush1.msra.mxu0 %v1748
    %1788 = vmatprep.subr.mxu0 0.0
    %1789 = vmatpush1.msra.mxu0 %v1746
    %1790 = vmatprep.subr.mxu0 0.0
    %1791 = vmatpush1.msra.mxu0 %v1744
    %1792 = vmatprep.subr.mxu0 0.0
    %1793 = vmatpush1.msra.mxu0 %v1742
    %1794 = vmatprep.subr.mxu0 0.0
    %1795 = vmatpush2.msra.mxu0 0.0
    %1796 = vmatprep.subr.mxu0 0.0
    %1797 = vmatpush2.msra.mxu0 0.0
    %1798 = vmatprep.subr.mxu0 0.0
    %1799 = vmatpush2.msra.mxu0 0.0
    %1800 = vmatprep.subr.mxu0 0.0
    %1801 = vmatpush2.msra.mxu0 0.0
    %1802 = vmatprep.subr.mxu0 0.0
    %1803 = vmatpush2.msra.mxu0 0.0
    %1804 = vmatprep.subr.mxu0 0.0
    %1805 = vmatpush2.msra.mxu0 0.0
    %1806 = vmatprep.subr.mxu0 0.0
    %1807 = vmatpush2.msra.mxu0 0.0
    %1808 = vmatprep.subr.mxu0 0.0
    %1809 = vmatpush2.msra.mxu0 0.0
    %1810 = vmatprep.subr.mxu0 0.0
    %1811 = vmatpush2.msra.mxu0 0.0
    %1812 = vmatprep.subr.mxu0 0.0
    %1813 = vmatpush2.msra.mxu0 0.0
    %1814 = vmatprep.subr.mxu0 0.0
    %1815 = vmatpush2.msra.mxu0 0.0
    %1816 = vmatprep.subr.mxu0 0.0
    %1817 = vmatpush2.msra.mxu0 0.0
    %1818 = vmatprep.subr.mxu0 0.0
    %1819 = vmatpush2.msra.mxu0 0.0
    %1820 = vmatprep.subr.mxu0 0.0
    %1821 = vmatpush2.msra.mxu0 0.0
    %1822 = vmatprep.subr.mxu0 0.0
    %1823 = vmatpush2.msra.mxu0 0.0
    %1824 = vmatprep.subr.mxu0 0.0
    %1825 = vmatpush2.msra.mxu0 0.0
    %1826 = vmatprep.mubr.f32.mxu0 0.0
    %1827 = vmatmul.mubr.f32.gmra.mxu0 %v1757
    %v1828 = vpop.f32.mrf.mxu0
    %v1829 = vadd.f32 %v1754, %v1828
    %v1830 = vpop.f32.mrf.mxu0
    %1831 = vmatprep.mubr.f32.mxu0 0.0
    %1832 = vmatmul.mubr.f32.gmra.mxu0 %v1760
    %v1833 = vpop.f32.mrf.mxu0
    %v1834 = vadd.f32 %v1754, %v1833
    %v1835 = vpop.f32.mrf.mxu0
    %1836 = vdwg.mxu0
    %1837 = vst.msk [vmem:[#allocation8] sm:$0xff] %vm67, %v1829
    %1838 = vst.msk [vmem:[#allocation8 + $0x8] sm:$0xff] %vm67, %v1834
    // Predicated region
    $region26: #{tpu_custom_call.1} parent=1 // pred_check
      _
    $region27: #{tpu_custom_call.1} parent=1 // pred_check_branch
      %1840 = sbr.rel (0) target = $region29
    $region28: #{tpu_custom_call.1} parent=1 // pred_region
      %s1842 = ssub.s32 256, 256
      %1843 = vsyncadd [#allocation4], %s1842
      %s1844 = sshll.u32 [#allocation8], 4
      %s1845 = int_to_ptr.vmem [resolvable:$true] %s1844
      %1850 = dma.vmem_to_hbm [thread:$0]  %s1845, 256, %s3, [#allocation4], 128, 128, 8
    $region29: #{tpu_custom_call.1} parent=1 // pred_fallthru
      _
    // Predicated region
    $region30: #{tpu_custom_call.1} parent=1 // pred_check
      _
    $region31: #{tpu_custom_call.1} parent=1 // pred_check_branch
      %1852 = sbr.rel (0) target = $region33
    $region32: #{tpu_custom_call.1} parent=1 // pred_region
      %1853 = dma.done [#allocation4], 256
    $region33: #{tpu_custom_call.1} parent=1 // pred_fallthru
      _
    %1854 = vsyncpa [#allocation3], 1
    %1855 = vsyncpa [#allocation6], 1
    %1856 = vsyncpa [#allocation4], 1

</llo_original>
